<compile_context>
chip_gen: v5e
topology: v5e:2x2
jax: 0.10.0
libtpu: 0.0.40
codegen_flags: <defaults>
</compile_context>

<pallas_src>
import math

import jax
import jax.numpy as jnp
from jax.experimental import pallas as pl
from jax.experimental.pallas import tpu as pltpu

SQRT_2_OVER_PI = 0.7978845608028654


def _round_up(x, m):
    return (x + m - 1) // m * m


# ---------------------------------------------------------------------------
# Fused Pallas kernel: conv, conv1, conv2..conv8, GELU tail — one call.
# ---------------------------------------------------------------------------
def _fused_kernel(p0_ref,
                  w0_ref, w1_ref, w2_ref, w3_ref, w4_ref, w5_ref,
                  w6_ref, w7_ref, w8_ref,
                  b0_ref, b1_ref, b2_ref, b3_ref, b4_ref, b5_ref,
                  b6_ref, b7_ref, b8_ref,
                  out_ref):
    f32 = jnp.float32
    bf16 = jnp.bfloat16
    tm = out_ref.shape[0]

    def mm(x, w_ref):  # bf16 MXU matmul, f32 accumulation
        return jnp.dot(x.astype(bf16), w_ref[...], preferred_element_type=f32)

    # conv (8 -> 64, k=2, s=2, p=1): im2col rows (TM,32) @ (32,128) + bias.
    # Output lanes 64:127 of w0/b0 are zero padding.
    v1 = mm(p0_ref[...], w0_ref) + b0_ref[...]

    # conv1 (64 -> 64, k=2, s=2, p=1) on the 2x2 map: output pixel p (= row%4)
    # sees exactly one input pixel (the same flattened row) through kernel tap
    # (1 - p//2, 1 - p%2).  The four per-position matmuls are merged into ONE
    # (TM,512)@(512,128) dot: lane block [128t, 128t+128) of the LHS holds v1
    # masked to rows with pos == t; row block [128t, 128t+128) of w1 holds that
    # tap's weights (real rows 0:63, output packed into lanes 64:127).
    pos = jax.lax.broadcasted_iota(jnp.int32, (tm, 128), 0) % 4
    v1b = v1.astype(bf16)
    zero = jnp.zeros_like(v1b)
    lhs1 = jnp.concatenate(
        [jnp.where(pos == t, v1b, zero) for t in range(4)], axis=-1)
    v2 = jnp.dot(lhs1, w1_ref[...], preferred_element_type=f32) + b1_ref[...]

    # 1x1 convs (plain matmuls).  v2's real channels live in lanes 64:127, so
    # w2's real rows sit at 64:127 (rows 0:63 are zero).
    v3 = mm(v2, w2_ref) + b2_ref[...]      # 64  -> 128
    v4 = mm(v3, w3_ref) + b3_ref[...]      # 128 -> 128
    v5 = mm(v4, w4_ref) + b4_ref[...]      # 128 -> 128

    # conv5 over torch.cat([v1, v2, v3, v4, v5], channels) as ONE deep-K
    # matmul: (v1 + v2) is exactly cat channels 0:127 in packed lane order.
    cat = jnp.concatenate(
        [(v1 + v2).astype(bf16), v3.astype(bf16),
         v4.astype(bf16), v5.astype(bf16)], axis=-1)       # (TM, 512)
    v7 = jnp.dot(cat, w5_ref[...], preferred_element_type=f32) + b5_ref[...]

    v8 = mm(v7, w6_ref) + b6_ref[...]      # 256 -> 256
    v9 = mm(v8, w7_ref) + b7_ref[...]      # 256 -> 256
    v10 = mm(v9, w8_ref) + b8_ref[...]     # 256 -> 512

    # tanh-GELU tail (v11..v19), all f32 on VPU/EUP.
    v11 = v10 * 0.5
    v14 = (v10 * v10 * v10) * 0.044715
    v16 = (v10 + v14) * SQRT_2_OVER_PI
    v17 = jnp.tanh(v16)
    out_ref[...] = v11 * (v17 + 1.0)


_PARAM_ORDER = ("w0", "w1", "w2", "w3", "w4", "w5", "w6", "w7", "w8",
                "b0", "b1", "b2", "b3", "b4", "b5", "b6", "b7", "b8")


def fused_forward(p0, params, tm):
    Mp = p0.shape[0]
    assert Mp % tm == 0 and tm % 8 == 0
    weights = [params[n] for n in _PARAM_ORDER]
    # Constant index_map -> weights/biases stay VMEM-resident across grid steps.
    w_specs = [pl.BlockSpec(w.shape, lambda i: (0, 0)) for w in weights]
    return pl.pallas_call(
        _fused_kernel,
        out_shape=jax.ShapeDtypeStruct((Mp, 512), jnp.float32),
        grid=(Mp // tm,),
        in_specs=[pl.BlockSpec((tm, 32), lambda i: (i, 0))] + w_specs,
        out_specs=pl.BlockSpec((tm, 512), lambda i: (i, 0)),
        compiler_params=pltpu.CompilerParams(
            dimension_semantics=("parallel",),   # v7x: split tiles over 2 TCs
            vmem_limit_bytes=32 * 1024 * 1024),
    )(p0, *weights)


# ---------------------------------------------------------------------------
# Wrapper-side glue: im2col for the FIRST conv only (k=2, s=2, p=1)
# ---------------------------------------------------------------------------
def extract_patches_k2_s2_p1(x_nhwc):
    N, H, W, C = x_nhwc.shape
    oH = (H + 2 - 2) // 2 + 1
    oW = (W + 2 - 2) // 2 + 1
    xp = jnp.pad(x_nhwc, ((0, 0), (1, 1), (1, 1), (0, 0)))
    xp = xp[:, : 2 * oH, : 2 * oW, :]
    xp = xp.reshape(N, oH, 2, oW, 2, C).transpose(0, 1, 3, 2, 4, 5)
    return xp.reshape(N * oH * oW, 2 * 2 * C), oH, oW


# ---------------------------------------------------------------------------
# Parameters (PyTorch Conv2d-style uniform init), then Pallas-friendly packing
# ---------------------------------------------------------------------------
def init_conv_params(key, c_in, c_out, k):
    fan_in = c_in * k * k
    bound = 1.0 / math.sqrt(fan_in)
    kw_, kb_ = jax.random.split(key)
    w = jax.random.uniform(kw_, (k, k, c_in, c_out), jnp.float32, -bound, bound)
    b = jax.random.uniform(kb_, (c_out,), jnp.float32, -bound, bound)
    return w, b


def _pad2d(a, rows=None, cols=None):
    r = a.shape[0] if rows is None else rows
    c = a.shape[1] if cols is None else cols
    return jnp.zeros((r, c), a.dtype).at[: a.shape[0], : a.shape[1]].set(a)


def prepare_params(raw):
    f32, bf16 = jnp.float32, jnp.bfloat16

    # conv (2,2,8,64) -> im2col weight (32,64), output padded to 128 lanes.
    w_c, b_c = raw["conv"]
    w0 = _pad2d(w_c.reshape(2 * 2 * 8, 64), cols=128).astype(bf16)
    b0 = _pad2d(b_c.reshape(1, 64), cols=128).astype(f32)

    # conv1 (2,2,64,64): stack the four per-output-position taps along K
    # (tap for pos p=(oi,oj) is w[1-oi, 1-oj]); output channels packed into
    # lanes 64:127 so (v1 + v2) reproduces the first 128 cat channels.
    w_c1, b_c1 = raw["conv1"]
    blocks = []
    for p in range(4):
        oi, oj = p // 2, p % 2
        blk = jnp.zeros((128, 128), f32).at[:64, 64:].set(w_c1[1 - oi, 1 - oj])
        blocks.append(blk)
    w1 = jnp.concatenate(blocks, axis=0).astype(bf16)          # (512, 128)
    b1 = jnp.zeros((1, 128), f32).at[:, 64:].set(b_c1.reshape(1, 64))

    # conv2 (64 -> 128): v2's real channels live in lanes 64:127.
    w_c2, b_c2 = raw["conv2"]
    w2 = jnp.zeros((128, 128), f32).at[64:, :].set(
        w_c2.reshape(64, 128)).astype(bf16)
    b2 = b_c2.reshape(1, 128).astype(f32)

    w_c3, b_c3 = raw["conv3"]
    w3 = w_c3.reshape(128, 128).astype(bf16)
    b3 = b_c3.reshape(1, 128).astype(f32)

    w_c4, b_c4 = raw["conv4"]
    w4 = w_c4.reshape(128, 128).astype(bf16)
    b4 = b_c4.reshape(1, 128).astype(f32)

    # conv5 (1,1,512,256): cat channel order == packed lane order -> no split.
    w_c5, b_c5 = raw["conv5"]
    w5 = w_c5.reshape(512, 256).astype(bf16)
    b5 = b_c5.reshape(1, 256).astype(f32)

    w_c6, b_c6 = raw["conv6"]
    w6 = w_c6.reshape(256, 256).astype(bf16)
    b6 = b_c6.reshape(1, 256).astype(f32)

    w_c7, b_c7 = raw["conv7"]
    w7 = w_c7.reshape(256, 256).astype(bf16)
    b7 = b_c7.reshape(1, 256).astype(f32)

    w_c8, b_c8 = raw["conv8"]
    w8 = w_c8.reshape(256, 512).astype(bf16)
    b8 = b_c8.reshape(1, 512).astype(f32)

    return dict(w0=w0, w1=w1, w2=w2, w3=w3, w4=w4, w5=w5, w6=w6, w7=w7, w8=w8,
                b0=b0, b1=b1, b2=b2, b3=b3, b4=b4, b5=b5, b6=b6, b7=b7, b8=b8)


# ---------------------------------------------------------------------------
# Forward pass (NCHW in / NCHW out)
# ---------------------------------------------------------------------------
def model_forward(x_nchw, params, *, tm=512):
    x = jnp.transpose(x_nchw, (0, 2, 3, 1)).astype(jnp.float32)   # NCHW -> NHWC
    N = x.shape[0]
    p0, oH, oW = extract_patches_k2_s2_p1(x)                      # (M, 32)
    # The in-kernel one-tap-per-pixel conv1 trick requires 2x2 post-conv maps
    # (also the only case where the reference torch.cat is well defined).
    assert (oH, oW) == (2, 2), "input spatial size must give 2x2 feature maps"
    M = N * oH * oW
    tm_eff = min(tm, _round_up(M, 8))
    Mp = _round_up(M, tm_eff)
    p0 = p0.astype(jnp.bfloat16)                                  # halve input DMA
    if Mp != M:
        p0 = jnp.pad(p0, ((0, Mp - M), (0, 0)))
    out = fused_forward(p0, params, tm_eff)[:M]                   # (M, 512)
    return out.reshape(N, oH, oW, 512).transpose(0, 3, 1, 2)      # back to NCHW


# ---------------------------------------------------------------------------
# Pure-JAX f32 reference (lax.conv), mirrors the PyTorch module exactly
# ---------------------------------------------------------------------------
def reference_forward(x_nchw, raw):
    def conv(x, p, stride, padding):
        w, b = p
        y = jax.lax.conv_general_dilated(
            x, w, window_strides=(stride, stride),
            padding=((padding, padding), (padding, padding)),
            dimension_numbers=("NCHW", "HWIO", "NCHW"))
        return y + b.reshape(1, -1, 1, 1)

    v1 = conv(x_nchw, raw["conv"], 2, 1)
    v2 = conv(v1, raw["conv1"], 2, 1)
    v3 = conv(v2, raw["conv2"], 1, 0)
    v4 = conv(v3, raw["conv3"], 1, 0)
    v5 = conv(v4, raw["conv4"], 1, 0)
    v6 = jnp.concatenate([v1, v2, v3, v4, v5], axis=1)
    v7 = conv(v6, raw["conv5"], 1, 0)
    v8 = conv(v7, raw["conv6"], 1, 0)
    v9 = conv(v8, raw["conv7"], 1, 0)
    v10 = conv(v9, raw["conv8"], 1, 0)
    v11 = v10 * 0.5
    v14 = (v10 * v10 * v10) * 0.044715
    v16 = (v10 + v14) * SQRT_2_OVER_PI
    v17 = jnp.tanh(v16)
    return v11 * (v17 + 1.0)


# ---------------------------------------------------------------------------
if __name__ == "__main__":
    key = jax.random.PRNGKey(0)
    keys = jax.random.split(key, 10)

    raw = {
        "conv":  init_conv_params(keys[0], 8, 64, 2),
        "conv1": init_conv_params(keys[1], 64, 64, 2),
        "conv2": init_conv_params(keys[2], 64, 128, 1),
        "conv3": init_conv_params(keys[3], 128, 128, 1),
        "conv4": init_conv_params(keys[4], 128, 128, 1),
        # TODO(synk): reference declares Conv2d(128, 256) for conv5, but the
        # torch.cat output has 512 channels; 512 in-channels is what the
        # dataflow actually requires.
        "conv5": init_conv_params(keys[5], 512, 256, 1),
        "conv6": init_conv_params(keys[6], 256, 256, 1),
        "conv7": init_conv_params(keys[7], 256, 256, 1),
        "conv8": init_conv_params(keys[8], 256, 512, 1),
    }
    params = prepare_params(raw)

    # 3x3 spatial input so both stride-2 convs yield 2x2 maps (cat-compatible);
    # batch=2 keeps the example small.
    x = jax.random.normal(keys[9], (2, 8, 3, 3), jnp.float32)

    out = jax.jit(model_forward)(x, params)
    jax.block_until_ready(out)
    assert out.shape == (2, 512, 2, 2)

    ref = reference_forward(x, raw)
    rel = float(jnp.linalg.norm(out - ref)
                / jnp.maximum(jnp.linalg.norm(ref), 1e-6))
    assert rel < 3e-2, f"kernel/reference mismatch: rel={rel}"
    print("KERNEL_OK")
</pallas_src>

<mosaic_0001>
module attributes {stable_mosaic.version = 11 : i64} {
  func.func @_fused_kernel(%arg0: i32, %arg1: memref<8x32xbf16, #tpu.memory_space<vmem>>, %arg2: memref<32x128xbf16, #tpu.memory_space<vmem>>, %arg3: memref<512x128xbf16, #tpu.memory_space<vmem>>, %arg4: memref<128x128xbf16, #tpu.memory_space<vmem>>, %arg5: memref<128x128xbf16, #tpu.memory_space<vmem>>, %arg6: memref<128x128xbf16, #tpu.memory_space<vmem>>, %arg7: memref<512x256xbf16, #tpu.memory_space<vmem>>, %arg8: memref<256x256xbf16, #tpu.memory_space<vmem>>, %arg9: memref<256x256xbf16, #tpu.memory_space<vmem>>, %arg10: memref<256x512xbf16, #tpu.memory_space<vmem>>, %arg11: memref<1x128xf32, #tpu.memory_space<vmem>>, %arg12: memref<1x128xf32, #tpu.memory_space<vmem>>, %arg13: memref<1x128xf32, #tpu.memory_space<vmem>>, %arg14: memref<1x128xf32, #tpu.memory_space<vmem>>, %arg15: memref<1x128xf32, #tpu.memory_space<vmem>>, %arg16: memref<1x256xf32, #tpu.memory_space<vmem>>, %arg17: memref<1x256xf32, #tpu.memory_space<vmem>>, %arg18: memref<1x256xf32, #tpu.memory_space<vmem>>, %arg19: memref<1x512xf32, #tpu.memory_space<vmem>>, %arg20: memref<8x512xf32, #tpu.memory_space<vmem>>) attributes {dimension_semantics = [#tpu.dimension_semantics<parallel>], iteration_bounds = array<i64: 1>, scalar_prefetch = 0 : i64, scratch_operands = 0 : i64, tpu.core_type = #tpu.core_type<tc>, window_params = [{transform_indices = @transform_0, window_bounds = array<i64: 8, 32>}, {pipeline_mode = #tpu.pipeline_mode<synchronous>, transform_indices = @transform_1, window_bounds = array<i64: 32, 128>}, {pipeline_mode = #tpu.pipeline_mode<synchronous>, transform_indices = @transform_2, window_bounds = array<i64: 512, 128>}, {pipeline_mode = #tpu.pipeline_mode<synchronous>, transform_indices = @transform_3, window_bounds = array<i64: 128, 128>}, {pipeline_mode = #tpu.pipeline_mode<synchronous>, transform_indices = @transform_4, window_bounds = array<i64: 128, 128>}, {pipeline_mode = #tpu.pipeline_mode<synchronous>, transform_indices = @transform_5, window_bounds = array<i64: 128, 128>}, {pipeline_mode = #tpu.pipeline_mode<synchronous>, transform_indices = @transform_6, window_bounds = array<i64: 512, 256>}, {pipeline_mode = #tpu.pipeline_mode<synchronous>, transform_indices = @transform_7, window_bounds = array<i64: 256, 256>}, {pipeline_mode = #tpu.pipeline_mode<synchronous>, transform_indices = @transform_8, window_bounds = array<i64: 256, 256>}, {pipeline_mode = #tpu.pipeline_mode<synchronous>, transform_indices = @transform_9, window_bounds = array<i64: 256, 512>}, {pipeline_mode = #tpu.pipeline_mode<synchronous>, transform_indices = @transform_10, window_bounds = array<i64: 1, 128>}, {pipeline_mode = #tpu.pipeline_mode<synchronous>, transform_indices = @transform_11, window_bounds = array<i64: 1, 128>}, {pipeline_mode = #tpu.pipeline_mode<synchronous>, transform_indices = @transform_12, window_bounds = array<i64: 1, 128>}, {pipeline_mode = #tpu.pipeline_mode<synchronous>, transform_indices = @transform_13, window_bounds = array<i64: 1, 128>}, {pipeline_mode = #tpu.pipeline_mode<synchronous>, transform_indices = @transform_14, window_bounds = array<i64: 1, 128>}, {pipeline_mode = #tpu.pipeline_mode<synchronous>, transform_indices = @transform_15, window_bounds = array<i64: 1, 256>}, {pipeline_mode = #tpu.pipeline_mode<synchronous>, transform_indices = @transform_16, window_bounds = array<i64: 1, 256>}, {pipeline_mode = #tpu.pipeline_mode<synchronous>, transform_indices = @transform_17, window_bounds = array<i64: 1, 256>}, {pipeline_mode = #tpu.pipeline_mode<synchronous>, transform_indices = @transform_18, window_bounds = array<i64: 1, 512>}, {transform_indices = @transform_19, window_bounds = array<i64: 8, 512>}]} {
    %c0 = arith.constant 0 : index
    %c0_0 = arith.constant 0 : index
    %0 = vector.load %arg1[%c0, %c0_0] : memref<8x32xbf16, #tpu.memory_space<vmem>>, vector<8x32xbf16>
    %c0_1 = arith.constant 0 : index
    %c0_2 = arith.constant 0 : index
    %1 = vector.load %arg2[%c0_1, %c0_2] : memref<32x128xbf16, #tpu.memory_space<vmem>>, vector<32x128xbf16>
    %cst = arith.constant dense<0.000000e+00> : vector<8x128xf32>
    %2 = tpu.matmul %0, %1, %cst {dimension_numbers = #tpu.dot_dimension_numbers<[1], [0], [0], [1], [0, 0, 1, 1], [], []>} : vector<8x32xbf16>, vector<32x128xbf16>, vector<8x128xf32> -> vector<8x128xf32>
    %c0_3 = arith.constant 0 : index
    %c0_4 = arith.constant 0 : index
    %3 = vector.load %arg11[%c0_3, %c0_4] : memref<1x128xf32, #tpu.memory_space<vmem>>, vector<1x128xf32>
    %4 = vector.broadcast %3 : vector<1x128xf32> to vector<8x128xf32>
    %5 = arith.addf %2, %4 : vector<8x128xf32>
    %6 = tpu.iota {dimensions = array<i32: 0>} : vector<8x128xi32>
    %c4_i32 = arith.constant 4 : i32
    %c0_i32 = arith.constant 0 : i32
    %7 = arith.cmpi eq, %c4_i32, %c0_i32 : i32
    %c1_i32 = arith.constant 1 : i32
    %8 = arith.select %7, %c1_i32, %c4_i32 : i32
    %9 = vector.broadcast %8 : i32 to vector<8x128xi32>
    %10 = arith.remsi %6, %9 : vector<8x128xi32>
    %c0_i32_5 = arith.constant 0 : i32
    %11 = vector.broadcast %c0_i32_5 : i32 to vector<8x128xi32>
    %12 = arith.cmpi ne, %10, %11 : vector<8x128xi32>
    %c0_i32_6 = arith.constant 0 : i32
    %13 = vector.broadcast %c0_i32_6 : i32 to vector<8x128xi32>
    %14 = arith.cmpi slt, %10, %13 : vector<8x128xi32>
    %c0_i32_7 = arith.constant 0 : i32
    %15 = arith.cmpi slt, %8, %c0_i32_7 : i32
    %16 = vector.broadcast %15 : i1 to vector<8x128xi1>
    %17 = vector.broadcast %16 : vector<8x128xi1> to vector<8x128xi1>
    %18 = arith.xori %14, %17 : vector<8x128xi1>
    %19 = arith.andi %18, %12 : vector<8x128xi1>
    %20 = vector.broadcast %8 : i32 to vector<8x128xi32>
    %21 = arith.addi %10, %20 : vector<8x128xi32>
    %22 = arith.select %19, %21, %10 : vector<8x128xi1>, vector<8x128xi32>
    %23 = arith.truncf %5 : vector<8x128xf32> to vector<8x128xbf16>
    %cst_8 = arith.constant 0.000000e+00 : bf16
    %24 = vector.broadcast %cst_8 : bf16 to vector<8x128xbf16>
    %c0_i32_9 = arith.constant 0 : i32
    %25 = vector.broadcast %c0_i32_9 : i32 to vector<8x128xi32>
    %26 = arith.cmpi eq, %22, %25 : vector<8x128xi32>
    %27 = arith.select %26, %23, %24 : vector<8x128xi1>, vector<8x128xbf16>
    %c1_i32_10 = arith.constant 1 : i32
    %28 = vector.broadcast %c1_i32_10 : i32 to vector<8x128xi32>
    %29 = arith.cmpi eq, %22, %28 : vector<8x128xi32>
    %30 = arith.select %29, %23, %24 : vector<8x128xi1>, vector<8x128xbf16>
    %c2_i32 = arith.constant 2 : i32
    %31 = vector.broadcast %c2_i32 : i32 to vector<8x128xi32>
    %32 = arith.cmpi eq, %22, %31 : vector<8x128xi32>
    %33 = arith.select %32, %23, %24 : vector<8x128xi1>, vector<8x128xbf16>
    %c3_i32 = arith.constant 3 : i32
    %34 = vector.broadcast %c3_i32 : i32 to vector<8x128xi32>
    %35 = arith.cmpi eq, %22, %34 : vector<8x128xi32>
    %36 = arith.select %35, %23, %24 : vector<8x128xi1>, vector<8x128xbf16>
    %37 = tpu.concatenate %27, %30, %33, %36 in 1 : vector<8x128xbf16>, vector<8x128xbf16>, vector<8x128xbf16>, vector<8x128xbf16> -> vector<8x512xbf16>
    %c0_11 = arith.constant 0 : index
    %c0_12 = arith.constant 0 : index
    %38 = vector.load %arg3[%c0_11, %c0_12] : memref<512x128xbf16, #tpu.memory_space<vmem>>, vector<512x128xbf16>
    %cst_13 = arith.constant dense<0.000000e+00> : vector<8x128xf32>
    %39 = tpu.matmul %37, %38, %cst_13 {dimension_numbers = #tpu.dot_dimension_numbers<[1], [0], [0], [1], [0, 0, 1, 1], [], []>} : vector<8x512xbf16>, vector<512x128xbf16>, vector<8x128xf32> -> vector<8x128xf32>
    %c0_14 = arith.constant 0 : index
    %c0_15 = arith.constant 0 : index
    %40 = vector.load %arg12[%c0_14, %c0_15] : memref<1x128xf32, #tpu.memory_space<vmem>>, vector<1x128xf32>
    %41 = vector.broadcast %40 : vector<1x128xf32> to vector<8x128xf32>
    %42 = arith.addf %39, %41 : vector<8x128xf32>
    %43 = arith.truncf %42 : vector<8x128xf32> to vector<8x128xbf16>
    %c0_16 = arith.constant 0 : index
    %c0_17 = arith.constant 0 : index
    %44 = vector.load %arg4[%c0_16, %c0_17] : memref<128x128xbf16, #tpu.memory_space<vmem>>, vector<128x128xbf16>
    %cst_18 = arith.constant dense<0.000000e+00> : vector<8x128xf32>
    %45 = tpu.matmul %43, %44, %cst_18 {dimension_numbers = #tpu.dot_dimension_numbers<[1], [0], [0], [1], [0, 0, 1, 1], [], []>} : vector<8x128xbf16>, vector<128x128xbf16>, vector<8x128xf32> -> vector<8x128xf32>
    %c0_19 = arith.constant 0 : index
    %c0_20 = arith.constant 0 : index
    %46 = vector.load %arg13[%c0_19, %c0_20] : memref<1x128xf32, #tpu.memory_space<vmem>>, vector<1x128xf32>
    %47 = vector.broadcast %46 : vector<1x128xf32> to vector<8x128xf32>
    %48 = arith.addf %45, %47 : vector<8x128xf32>
    %49 = arith.truncf %48 : vector<8x128xf32> to vector<8x128xbf16>
    %c0_21 = arith.constant 0 : index
    %c0_22 = arith.constant 0 : index
    %50 = vector.load %arg5[%c0_21, %c0_22] : memref<128x128xbf16, #tpu.memory_space<vmem>>, vector<128x128xbf16>
    %cst_23 = arith.constant dense<0.000000e+00> : vector<8x128xf32>
    %51 = tpu.matmul %49, %50, %cst_23 {dimension_numbers = #tpu.dot_dimension_numbers<[1], [0], [0], [1], [0, 0, 1, 1], [], []>} : vector<8x128xbf16>, vector<128x128xbf16>, vector<8x128xf32> -> vector<8x128xf32>
    %c0_24 = arith.constant 0 : index
    %c0_25 = arith.constant 0 : index
    %52 = vector.load %arg14[%c0_24, %c0_25] : memref<1x128xf32, #tpu.memory_space<vmem>>, vector<1x128xf32>
    %53 = vector.broadcast %52 : vector<1x128xf32> to vector<8x128xf32>
    %54 = arith.addf %51, %53 : vector<8x128xf32>
    %55 = arith.truncf %54 : vector<8x128xf32> to vector<8x128xbf16>
    %c0_26 = arith.constant 0 : index
    %c0_27 = arith.constant 0 : index
    %56 = vector.load %arg6[%c0_26, %c0_27] : memref<128x128xbf16, #tpu.memory_space<vmem>>, vector<128x128xbf16>
    %cst_28 = arith.constant dense<0.000000e+00> : vector<8x128xf32>
    %57 = tpu.matmul %55, %56, %cst_28 {dimension_numbers = #tpu.dot_dimension_numbers<[1], [0], [0], [1], [0, 0, 1, 1], [], []>} : vector<8x128xbf16>, vector<128x128xbf16>, vector<8x128xf32> -> vector<8x128xf32>
    %c0_29 = arith.constant 0 : index
    %c0_30 = arith.constant 0 : index
    %58 = vector.load %arg15[%c0_29, %c0_30] : memref<1x128xf32, #tpu.memory_space<vmem>>, vector<1x128xf32>
    %59 = vector.broadcast %58 : vector<1x128xf32> to vector<8x128xf32>
    %60 = arith.addf %57, %59 : vector<8x128xf32>
    %61 = arith.addf %5, %42 : vector<8x128xf32>
    %62 = arith.truncf %61 : vector<8x128xf32> to vector<8x128xbf16>
    %63 = arith.truncf %48 : vector<8x128xf32> to vector<8x128xbf16>
    %64 = arith.truncf %54 : vector<8x128xf32> to vector<8x128xbf16>
    %65 = arith.truncf %60 : vector<8x128xf32> to vector<8x128xbf16>
    %66 = tpu.concatenate %62, %63, %64, %65 in 1 : vector<8x128xbf16>, vector<8x128xbf16>, vector<8x128xbf16>, vector<8x128xbf16> -> vector<8x512xbf16>
    %c0_31 = arith.constant 0 : index
    %c0_32 = arith.constant 0 : index
    %67 = vector.load %arg7[%c0_31, %c0_32] : memref<512x256xbf16, #tpu.memory_space<vmem>>, vector<512x256xbf16>
    %cst_33 = arith.constant dense<0.000000e+00> : vector<8x256xf32>
    %68 = tpu.matmul %66, %67, %cst_33 {dimension_numbers = #tpu.dot_dimension_numbers<[1], [0], [0], [1], [0, 0, 1, 1], [], []>} : vector<8x512xbf16>, vector<512x256xbf16>, vector<8x256xf32> -> vector<8x256xf32>
    %c0_34 = arith.constant 0 : index
    %c0_35 = arith.constant 0 : index
    %69 = vector.load %arg16[%c0_34, %c0_35] : memref<1x256xf32, #tpu.memory_space<vmem>>, vector<1x256xf32>
    %70 = vector.broadcast %69 : vector<1x256xf32> to vector<8x256xf32>
    %71 = arith.addf %68, %70 : vector<8x256xf32>
    %72 = arith.truncf %71 : vector<8x256xf32> to vector<8x256xbf16>
    %c0_36 = arith.constant 0 : index
    %c0_37 = arith.constant 0 : index
    %73 = vector.load %arg8[%c0_36, %c0_37] : memref<256x256xbf16, #tpu.memory_space<vmem>>, vector<256x256xbf16>
    %cst_38 = arith.constant dense<0.000000e+00> : vector<8x256xf32>
    %74 = tpu.matmul %72, %73, %cst_38 {dimension_numbers = #tpu.dot_dimension_numbers<[1], [0], [0], [1], [0, 0, 1, 1], [], []>} : vector<8x256xbf16>, vector<256x256xbf16>, vector<8x256xf32> -> vector<8x256xf32>
    %c0_39 = arith.constant 0 : index
    %c0_40 = arith.constant 0 : index
    %75 = vector.load %arg17[%c0_39, %c0_40] : memref<1x256xf32, #tpu.memory_space<vmem>>, vector<1x256xf32>
    %76 = vector.broadcast %75 : vector<1x256xf32> to vector<8x256xf32>
    %77 = arith.addf %74, %76 : vector<8x256xf32>
    %78 = arith.truncf %77 : vector<8x256xf32> to vector<8x256xbf16>
    %c0_41 = arith.constant 0 : index
    %c0_42 = arith.constant 0 : index
    %79 = vector.load %arg9[%c0_41, %c0_42] : memref<256x256xbf16, #tpu.memory_space<vmem>>, vector<256x256xbf16>
    %cst_43 = arith.constant dense<0.000000e+00> : vector<8x256xf32>
    %80 = tpu.matmul %78, %79, %cst_43 {dimension_numbers = #tpu.dot_dimension_numbers<[1], [0], [0], [1], [0, 0, 1, 1], [], []>} : vector<8x256xbf16>, vector<256x256xbf16>, vector<8x256xf32> -> vector<8x256xf32>
    %c0_44 = arith.constant 0 : index
    %c0_45 = arith.constant 0 : index
    %81 = vector.load %arg18[%c0_44, %c0_45] : memref<1x256xf32, #tpu.memory_space<vmem>>, vector<1x256xf32>
    %82 = vector.broadcast %81 : vector<1x256xf32> to vector<8x256xf32>
    %83 = arith.addf %80, %82 : vector<8x256xf32>
    %84 = arith.truncf %83 : vector<8x256xf32> to vector<8x256xbf16>
    %c0_46 = arith.constant 0 : index
    %c0_47 = arith.constant 0 : index
    %85 = vector.load %arg10[%c0_46, %c0_47] : memref<256x512xbf16, #tpu.memory_space<vmem>>, vector<256x512xbf16>
    %cst_48 = arith.constant dense<0.000000e+00> : vector<8x512xf32>
    %86 = tpu.matmul %84, %85, %cst_48 {dimension_numbers = #tpu.dot_dimension_numbers<[1], [0], [0], [1], [0, 0, 1, 1], [], []>} : vector<8x256xbf16>, vector<256x512xbf16>, vector<8x512xf32> -> vector<8x512xf32>
    %c0_49 = arith.constant 0 : index
    %c0_50 = arith.constant 0 : index
    %87 = vector.load %arg19[%c0_49, %c0_50] : memref<1x512xf32, #tpu.memory_space<vmem>>, vector<1x512xf32>
    %88 = vector.broadcast %87 : vector<1x512xf32> to vector<8x512xf32>
    %89 = arith.addf %86, %88 : vector<8x512xf32>
    %cst_51 = arith.constant 5.000000e-01 : f32
    %90 = vector.broadcast %cst_51 : f32 to vector<8x512xf32>
    %91 = arith.mulf %89, %90 : vector<8x512xf32>
    %92 = arith.mulf %89, %89 : vector<8x512xf32>
    %93 = arith.mulf %92, %89 : vector<8x512xf32>
    %cst_52 = arith.constant 4.471500e-02 : f32
    %94 = vector.broadcast %cst_52 : f32 to vector<8x512xf32>
    %95 = arith.mulf %93, %94 : vector<8x512xf32>
    %96 = arith.addf %89, %95 : vector<8x512xf32>
    %cst_53 = arith.constant 0.797884583 : f32
    %97 = vector.broadcast %cst_53 : f32 to vector<8x512xf32>
    %98 = arith.mulf %96, %97 : vector<8x512xf32>
    %99 = math.tanh %98 : vector<8x512xf32>
    %cst_54 = arith.constant 1.000000e+00 : f32
    %100 = vector.broadcast %cst_54 : f32 to vector<8x512xf32>
    %101 = arith.addf %99, %100 : vector<8x512xf32>
    %102 = arith.mulf %91, %101 : vector<8x512xf32>
    %c0_55 = arith.constant 0 : index
    %c0_56 = arith.constant 0 : index
    %103 = vector.load %arg20[%c0_55, %c0_56] : memref<8x512xf32, #tpu.memory_space<vmem>>, vector<8x512xf32>
    tpu.vector_store %arg20[%c0_55, %c0_56], %102 {strides = array<i32>} : memref<8x512xf32, #tpu.memory_space<vmem>>, vector<8x512xf32>,
    return
  }
  func.func @transform_0(%arg0: i32) -> (i32, i32) {
    %c0_i32 = arith.constant 0 : i32
    %c0_i32_0 = arith.constant 0 : i32
    return %arg0, %c0_i32 : i32, i32
  }
  func.func @transform_1(%arg0: i32) -> (i32, i32) {
    %c0_i32 = arith.constant 0 : i32
    %c0_i32_0 = arith.constant 0 : i32
    %c0_i32_1 = arith.constant 0 : i32
    return %c0_i32, %c0_i32_0 : i32, i32
  }
  func.func @transform_2(%arg0: i32) -> (i32, i32) {
    %c0_i32 = arith.constant 0 : i32
    %c0_i32_0 = arith.constant 0 : i32
    %c0_i32_1 = arith.constant 0 : i32
    return %c0_i32, %c0_i32_0 : i32, i32
  }
  func.func @transform_3(%arg0: i32) -> (i32, i32) {
    %c0_i32 = arith.constant 0 : i32
    %c0_i32_0 = arith.constant 0 : i32
    %c0_i32_1 = arith.constant 0 : i32
    return %c0_i32, %c0_i32_0 : i32, i32
  }
  func.func @transform_4(%arg0: i32) -> (i32, i32) {
    %c0_i32 = arith.constant 0 : i32
    %c0_i32_0 = arith.constant 0 : i32
    %c0_i32_1 = arith.constant 0 : i32
    return %c0_i32, %c0_i32_0 : i32, i32
  }
  func.func @transform_5(%arg0: i32) -> (i32, i32) {
    %c0_i32 = arith.constant 0 : i32
    %c0_i32_0 = arith.constant 0 : i32
    %c0_i32_1 = arith.constant 0 : i32
    return %c0_i32, %c0_i32_0 : i32, i32
  }
  func.func @transform_6(%arg0: i32) -> (i32, i32) {
    %c0_i32 = arith.constant 0 : i32
    %c0_i32_0 = arith.constant 0 : i32
    %c0_i32_1 = arith.constant 0 : i32
    return %c0_i32, %c0_i32_0 : i32, i32
  }
  func.func @transform_7(%arg0: i32) -> (i32, i32) {
    %c0_i32 = arith.constant 0 : i32
    %c0_i32_0 = arith.constant 0 : i32
    %c0_i32_1 = arith.constant 0 : i32
    return %c0_i32, %c0_i32_0 : i32, i32
  }
  func.func @transform_8(%arg0: i32) -> (i32, i32) {
    %c0_i32 = arith.constant 0 : i32
    %c0_i32_0 = arith.constant 0 : i32
    %c0_i32_1 = arith.constant 0 : i32
    return %c0_i32, %c0_i32_0 : i32, i32
  }
  func.func @transform_9(%arg0: i32) -> (i32, i32) {
    %c0_i32 = arith.constant 0 : i32
    %c0_i32_0 = arith.constant 0 : i32
    %c0_i32_1 = arith.constant 0 : i32
    return %c0_i32, %c0_i32_0 : i32, i32
  }
  func.func @transform_10(%arg0: i32) -> (i32, i32) {
    %c0_i32 = arith.constant 0 : i32
    %c0_i32_0 = arith.constant 0 : i32
    %c0_i32_1 = arith.constant 0 : i32
    return %c0_i32, %c0_i32_0 : i32, i32
  }
  func.func @transform_11(%arg0: i32) -> (i32, i32) {
    %c0_i32 = arith.constant 0 : i32
    %c0_i32_0 = arith.constant 0 : i32
    %c0_i32_1 = arith.constant 0 : i32
    return %c0_i32, %c0_i32_0 : i32, i32
  }
  func.func @transform_12(%arg0: i32) -> (i32, i32) {
    %c0_i32 = arith.constant 0 : i32
    %c0_i32_0 = arith.constant 0 : i32
    %c0_i32_1 = arith.constant 0 : i32
    return %c0_i32, %c0_i32_0 : i32, i32
  }
  func.func @transform_13(%arg0: i32) -> (i32, i32) {
    %c0_i32 = arith.constant 0 : i32
    %c0_i32_0 = arith.constant 0 : i32
    %c0_i32_1 = arith.constant 0 : i32
    return %c0_i32, %c0_i32_0 : i32, i32
  }
  func.func @transform_14(%arg0: i32) -> (i32, i32) {
    %c0_i32 = arith.constant 0 : i32
    %c0_i32_0 = arith.constant 0 : i32
    %c0_i32_1 = arith.constant 0 : i32
    return %c0_i32, %c0_i32_0 : i32, i32
  }
  func.func @transform_15(%arg0: i32) -> (i32, i32) {
    %c0_i32 = arith.constant 0 : i32
    %c0_i32_0 = arith.constant 0 : i32
    %c0_i32_1 = arith.constant 0 : i32
    return %c0_i32, %c0_i32_0 : i32, i32
  }
  func.func @transform_16(%arg0: i32) -> (i32, i32) {
    %c0_i32 = arith.constant 0 : i32
    %c0_i32_0 = arith.constant 0 : i32
    %c0_i32_1 = arith.constant 0 : i32
    return %c0_i32, %c0_i32_0 : i32, i32
  }
  func.func @transform_17(%arg0: i32) -> (i32, i32) {
    %c0_i32 = arith.constant 0 : i32
    %c0_i32_0 = arith.constant 0 : i32
    %c0_i32_1 = arith.constant 0 : i32
    return %c0_i32, %c0_i32_0 : i32, i32
  }
  func.func @transform_18(%arg0: i32) -> (i32, i32) {
    %c0_i32 = arith.constant 0 : i32
    %c0_i32_0 = arith.constant 0 : i32
    %c0_i32_1 = arith.constant 0 : i32
    return %c0_i32, %c0_i32_0 : i32, i32
  }
  func.func @transform_19(%arg0: i32) -> (i32, i32) {
    %c0_i32 = arith.constant 0 : i32
    %c0_i32_0 = arith.constant 0 : i32
    return %arg0, %c0_i32 : i32, i32
  }
}

</mosaic_0001>

<llo_original>
// kernel: model_forward.1
$region0: #{model_forward.1}
  #allocation0 [shape = 'u32[]', space=smem, size = 0x4, offset = 0x4, fixed_abs, tag = 'smem constant byte address 0x4 - core index']
  #allocation1 [shape = 'u32[72,128]{1,0:T(1,128)}', space=vmem, size = 0x9000, scoped, tag = 'internal scratch']
  %s0 = inlined_call_operand.vmem [shape: bf16[8,32], index: 0, kind: input, shape index: {}]
  %s1 = inlined_call_operand.vmem [shape: bf16[32,128], index: 1, kind: input, shape index: {}]
  %s2 = inlined_call_operand.hbm [shape: bf16[512,128], index: 2, kind: input, shape index: {}]
  %s3 = inlined_call_operand.vmem [shape: bf16[128,128], index: 3, kind: input, shape index: {}]
  %s4 = inlined_call_operand.hbm [shape: bf16[128,128], index: 4, kind: input, shape index: {}]
  %s5 = inlined_call_operand.hbm [shape: bf16[128,128], index: 5, kind: input, shape index: {}]
  %s6 = inlined_call_operand.hbm [shape: bf16[512,256], index: 6, kind: input, shape index: {}]
  %s7 = inlined_call_operand.hbm [shape: bf16[256,256], index: 7, kind: input, shape index: {}]
  %s8 = inlined_call_operand.hbm [shape: bf16[256,256], index: 8, kind: input, shape index: {}]
  %s9 = inlined_call_operand.hbm [shape: bf16[256,512], index: 9, kind: input, shape index: {}]
  %s10 = inlined_call_operand.vmem [shape: f32[1,128], index: 10, kind: input, shape index: {}]
  %s11 = inlined_call_operand.vmem [shape: f32[1,128], index: 11, kind: input, shape index: {}]
  %s12 = inlined_call_operand.vmem [shape: f32[1,128], index: 12, kind: input, shape index: {}]
  %s13 = inlined_call_operand.vmem [shape: f32[1,128], index: 13, kind: input, shape index: {}]
  %s14 = inlined_call_operand.vmem [shape: f32[1,128], index: 14, kind: input, shape index: {}]
  %s15 = inlined_call_operand.vmem [shape: f32[1,256], index: 15, kind: input, shape index: {}]
  %s16 = inlined_call_operand.vmem [shape: f32[1,256], index: 16, kind: input, shape index: {}]
  %s17 = inlined_call_operand.vmem [shape: f32[1,256], index: 17, kind: input, shape index: {}]
  %s18 = inlined_call_operand.vmem [shape: f32[1,512], index: 18, kind: input, shape index: {}]
  %s19 = inlined_call_operand.vmem [shape: f32[8,512], index: 19, kind: output, shape index: {}]
  %s20 = sld [smem:[#allocation0]]
  $region114: #{model_forward.1} parent=0
    _
  %s22 = ssub.s32 1, %s20
  %s23 = scalar_select 0, %s22, %s20
  $region1: #{model_forward.1} parent=0
    #allocation2 [shape = 'u8[131072]{0}', space=vmem, size = 0x20000, scoped, tag = 'input window, operand 2, single buffered']
    #allocation3 [shape = 's32[1]{0}', space=sflag, size = 0x4, scoped, tag = 'scoped memory for model_forward.1']
    #allocation4 [shape = 'u8[32768]{0}', space=vmem, size = 0x8000, scoped, tag = 'input window, operand 4, single buffered']
    #allocation5 [shape = 's32[1]{0}', space=sflag, size = 0x4, scoped, tag = 'scoped memory for model_forward.1']
    #allocation6 [shape = 'u8[32768]{0}', space=vmem, size = 0x8000, scoped, tag = 'input window, operand 5, single buffered']
    #allocation7 [shape = 'u8[262144]{0}', space=vmem, size = 0x40000, scoped, tag = 'input window, operand 6, single buffered']
    #allocation8 [shape = 's32[1]{0}', space=sflag, size = 0x4, scoped, tag = 'scoped memory for model_forward.1']
    #allocation9 [shape = 'u8[131072]{0}', space=vmem, size = 0x20000, scoped, tag = 'input window, operand 7, single buffered']
    #allocation10 [shape = 'u8[131072]{0}', space=vmem, size = 0x20000, scoped, tag = 'input window, operand 8, single buffered']
    #allocation11 [shape = 's32[1]{0}', space=sflag, size = 0x4, scoped, tag = 'scoped memory for model_forward.1']
    #allocation12 [shape = 'u8[262144]{0}', space=vmem, size = 0x40000, scoped, tag = 'input window, operand 9, single buffered']
    %24 = vsyncpa [#allocation3], 0
    %25 = vsyncpa [#allocation5], 0
    %26 = vsyncpa [#allocation8], 0
    %27 = vsyncpa [#allocation11], 0
    // Predicated region
    $region2: #{model_forward.1} parent=1 // pred_check
      _
    $region3: #{model_forward.1} parent=1 // pred_check_branch
      %29 = sbr.rel (0) target = $region5
    $region4: #{model_forward.1} parent=1 // pred_region
      _
    $region5: #{model_forward.1} parent=1 // pred_fallthru
      _
    // Predicated region
    $region6: #{model_forward.1} parent=1 // pred_check
      _
    $region7: #{model_forward.1} parent=1 // pred_check_branch
      %31 = sbr.rel (0) target = $region9
    $region8: #{model_forward.1} parent=1 // pred_region
      _
    $region9: #{model_forward.1} parent=1 // pred_fallthru
      _
    // Predicated region
    $region10: #{model_forward.1} parent=1 // pred_check
      _
    $region11: #{model_forward.1} parent=1 // pred_check_branch
      %33 = sbr.rel (0) target = $region13
    $region12: #{model_forward.1} parent=1 // pred_region
      %35 = vsyncadd [#allocation3], 0
      %s36 = sshll.u32 %s2, 4
      %s37 = int_to_ptr.hbm [resolvable:$true] %s36
      %s38 = sshll.u32 [#allocation2], 4
      %s39 = int_to_ptr.vmem [resolvable:$true] %s38
      %44 = dma.hbm_to_vmem [thread:$0]  %s37, 4096, %s39, [#allocation3], 64, 64, 4
    $region13: #{model_forward.1} parent=1 // pred_fallthru
      _
    // Predicated region
    $region14: #{model_forward.1} parent=1 // pred_check
      _
    $region15: #{model_forward.1} parent=1 // pred_check_branch
      %46 = sbr.rel (0) target = $region17
    $region16: #{model_forward.1} parent=1 // pred_region
      _
    $region17: #{model_forward.1} parent=1 // pred_fallthru
      _
    // Predicated region
    $region18: #{model_forward.1} parent=1 // pred_check
      _
    $region19: #{model_forward.1} parent=1 // pred_check_branch
      %48 = sbr.rel (0) target = $region21
    $region20: #{model_forward.1} parent=1 // pred_region
      %50 = vsyncadd [#allocation5], 0
      %s51 = sshll.u32 %s4, 4
      %s52 = int_to_ptr.hbm [resolvable:$true] %s51
      %s53 = sshll.u32 [#allocation4], 4
      %s54 = int_to_ptr.vmem [resolvable:$true] %s53
      %59 = dma.hbm_to_vmem [thread:$0]  %s52, 1024, %s54, [#allocation5], 64, 64, 4
    $region21: #{model_forward.1} parent=1 // pred_fallthru
      _
    // Predicated region
    $region22: #{model_forward.1} parent=1 // pred_check
      _
    $region23: #{model_forward.1} parent=1 // pred_check_branch
      %61 = sbr.rel (0) target = $region25
    $region24: #{model_forward.1} parent=1 // pred_region
      %63 = vsyncadd [#allocation5], 0
      %s64 = sshll.u32 %s5, 4
      %s65 = int_to_ptr.hbm [resolvable:$true] %s64
      %s66 = sshll.u32 [#allocation6], 4
      %s67 = int_to_ptr.vmem [resolvable:$true] %s66
      %72 = dma.hbm_to_vmem [thread:$0]  %s65, 1024, %s67, [#allocation5], 64, 64, 4
    $region25: #{model_forward.1} parent=1 // pred_fallthru
      _
    // Predicated region
    $region26: #{model_forward.1} parent=1 // pred_check
      _
    $region27: #{model_forward.1} parent=1 // pred_check_branch
      %74 = sbr.rel (0) target = $region29
    $region28: #{model_forward.1} parent=1 // pred_region
      %76 = vsyncadd [#allocation8], 0
      %s77 = sshll.u32 %s6, 4
      %s78 = int_to_ptr.hbm [resolvable:$true] %s77
      %s79 = sshll.u32 [#allocation7], 4
      %s80 = int_to_ptr.vmem [resolvable:$true] %s79
      %85 = dma.hbm_to_vmem [thread:$0]  %s78, 8192, %s80, [#allocation8], 128, 128, 8
    $region29: #{model_forward.1} parent=1 // pred_fallthru
      _
    // Predicated region
    $region30: #{model_forward.1} parent=1 // pred_check
      _
    $region31: #{model_forward.1} parent=1 // pred_check_branch
      %87 = sbr.rel (0) target = $region33
    $region32: #{model_forward.1} parent=1 // pred_region
      %89 = vsyncadd [#allocation8], 0
      %s90 = sshll.u32 %s7, 4
      %s91 = int_to_ptr.hbm [resolvable:$true] %s90
      %s92 = sshll.u32 [#allocation9], 4
      %s93 = int_to_ptr.vmem [resolvable:$true] %s92
      %98 = dma.hbm_to_vmem [thread:$0]  %s91, 4096, %s93, [#allocation8], 128, 128, 8
    $region33: #{model_forward.1} parent=1 // pred_fallthru
      _
    // Predicated region
    $region34: #{model_forward.1} parent=1 // pred_check
      _
    $region35: #{model_forward.1} parent=1 // pred_check_branch
      %100 = sbr.rel (0) target = $region37
    $region36: #{model_forward.1} parent=1 // pred_region
      %102 = vsyncadd [#allocation11], 0
      %s103 = sshll.u32 %s8, 4
      %s104 = int_to_ptr.hbm [resolvable:$true] %s103
      %s105 = sshll.u32 [#allocation10], 4
      %s106 = int_to_ptr.vmem [resolvable:$true] %s105
      %111 = dma.hbm_to_vmem [thread:$0]  %s104, 4096, %s106, [#allocation11], 128, 128, 8
    $region37: #{model_forward.1} parent=1 // pred_fallthru
      _
    // Predicated region
    $region38: #{model_forward.1} parent=1 // pred_check
      _
    $region39: #{model_forward.1} parent=1 // pred_check_branch
      %113 = sbr.rel (0) target = $region41
    $region40: #{model_forward.1} parent=1 // pred_region
      %115 = vsyncadd [#allocation11], 0
      %s116 = sshll.u32 %s9, 4
      %s117 = int_to_ptr.hbm [resolvable:$true] %s116
      %s118 = sshll.u32 [#allocation12], 4
      %s119 = int_to_ptr.vmem [resolvable:$true] %s118
      %124 = dma.hbm_to_vmem [thread:$0]  %s117, 8192, %s119, [#allocation11], 256, 256, 16
    $region41: #{model_forward.1} parent=1 // pred_fallthru
      _
    // Predicated region
    $region42: #{model_forward.1} parent=1 // pred_check
      _
    $region43: #{model_forward.1} parent=1 // pred_check_branch
      %126 = sbr.rel (0) target = $region45
    $region44: #{model_forward.1} parent=1 // pred_region
      _
    $region45: #{model_forward.1} parent=1 // pred_fallthru
      _
    // Predicated region
    $region46: #{model_forward.1} parent=1 // pred_check
      _
    $region47: #{model_forward.1} parent=1 // pred_check_branch
      %128 = sbr.rel (0) target = $region49
    $region48: #{model_forward.1} parent=1 // pred_region
      _
    $region49: #{model_forward.1} parent=1 // pred_fallthru
      _
    // Predicated region
    $region50: #{model_forward.1} parent=1 // pred_check
      _
    $region51: #{model_forward.1} parent=1 // pred_check_branch
      %130 = sbr.rel (0) target = $region53
    $region52: #{model_forward.1} parent=1 // pred_region
      _
    $region53: #{model_forward.1} parent=1 // pred_fallthru
      _
    // Predicated region
    $region54: #{model_forward.1} parent=1 // pred_check
      _
    $region55: #{model_forward.1} parent=1 // pred_check_branch
      %132 = sbr.rel (0) target = $region57
    $region56: #{model_forward.1} parent=1 // pred_region
      _
    $region57: #{model_forward.1} parent=1 // pred_fallthru
      _
    // Predicated region
    $region58: #{model_forward.1} parent=1 // pred_check
      _
    $region59: #{model_forward.1} parent=1 // pred_check_branch
      %134 = sbr.rel (0) target = $region61
    $region60: #{model_forward.1} parent=1 // pred_region
      _
    $region61: #{model_forward.1} parent=1 // pred_fallthru
      _
    // Predicated region
    $region62: #{model_forward.1} parent=1 // pred_check
      _
    $region63: #{model_forward.1} parent=1 // pred_check_branch
      %136 = sbr.rel (0) target = $region65
    $region64: #{model_forward.1} parent=1 // pred_region
      _
    $region65: #{model_forward.1} parent=1 // pred_fallthru
      _
    // Predicated region
    $region66: #{model_forward.1} parent=1 // pred_check
      _
    $region67: #{model_forward.1} parent=1 // pred_check_branch
      %138 = sbr.rel (0) target = $region69
    $region68: #{model_forward.1} parent=1 // pred_region
      _
    $region69: #{model_forward.1} parent=1 // pred_fallthru
      _
    // Predicated region
    $region70: #{model_forward.1} parent=1 // pred_check
      _
    $region71: #{model_forward.1} parent=1 // pred_check_branch
      %140 = sbr.rel (0) target = $region73
    $region72: #{model_forward.1} parent=1 // pred_region
      _
    $region73: #{model_forward.1} parent=1 // pred_fallthru
      _
    // Predicated region
    $region74: #{model_forward.1} parent=1 // pred_check
      _
    $region75: #{model_forward.1} parent=1 // pred_check_branch
      %142 = sbr.rel (0) target = $region77
    $region76: #{model_forward.1} parent=1 // pred_region
      _
    $region77: #{model_forward.1} parent=1 // pred_fallthru
      _
    // Predicated region
    $region78: #{model_forward.1} parent=1 // pred_check
      _
    $region79: #{model_forward.1} parent=1 // pred_check_branch
      %144 = sbr.rel (0) target = $region81
    $region80: #{model_forward.1} parent=1 // pred_region
      %146 = dma.done [#allocation3], 4096
    $region81: #{model_forward.1} parent=1 // pred_fallthru
      _
    // Predicated region
    $region82: #{model_forward.1} parent=1 // pred_check
      _
    $region83: #{model_forward.1} parent=1 // pred_check_branch
      %148 = sbr.rel (0) target = $region85
    $region84: #{model_forward.1} parent=1 // pred_region
      %150 = dma.done [#allocation5], 1024
    $region85: #{model_forward.1} parent=1 // pred_fallthru
      _
    // Predicated region
    $region86: #{model_forward.1} parent=1 // pred_check
      _
    $region87: #{model_forward.1} parent=1 // pred_check_branch
      %152 = sbr.rel (0) target = $region89
    $region88: #{model_forward.1} parent=1 // pred_region
      %154 = dma.done [#allocation5], 1024
    $region89: #{model_forward.1} parent=1 // pred_fallthru
      _
    // Predicated region
    $region90: #{model_forward.1} parent=1 // pred_check
      _
    $region91: #{model_forward.1} parent=1 // pred_check_branch
      %156 = sbr.rel (0) target = $region93
    $region92: #{model_forward.1} parent=1 // pred_region
      %158 = dma.done [#allocation8], 8192
    $region93: #{model_forward.1} parent=1 // pred_fallthru
      _
    // Predicated region
    $region94: #{model_forward.1} parent=1 // pred_check
      _
    $region95: #{model_forward.1} parent=1 // pred_check_branch
      %160 = sbr.rel (0) target = $region97
    $region96: #{model_forward.1} parent=1 // pred_region
      %162 = dma.done [#allocation8], 4096
    $region97: #{model_forward.1} parent=1 // pred_fallthru
      _
    // Predicated region
    $region98: #{model_forward.1} parent=1 // pred_check
      _
    $region99: #{model_forward.1} parent=1 // pred_check_branch
      %164 = sbr.rel (0) target = $region101
    $region100: #{model_forward.1} parent=1 // pred_region
      %166 = dma.done [#allocation11], 4096
    $region101: #{model_forward.1} parent=1 // pred_fallthru
      _
    // Predicated region
    $region102: #{model_forward.1} parent=1 // pred_check
      _
    $region103: #{model_forward.1} parent=1 // pred_check_branch
      %168 = sbr.rel (0) target = $region105
    $region104: #{model_forward.1} parent=1 // pred_region
      %170 = dma.done [#allocation11], 8192
    $region105: #{model_forward.1} parent=1 // pred_fallthru
      _
    %v172 = vld [vmem:[%s0] sm:$0xf]
    %v173 = vld [vmem:[%s1] sm:$0xf]
    %v174 = vld [vmem:[%s1 + $0x4] sm:$0xf]
    %v175 = vld [vmem:[%s1 + $0x8] sm:$0xf]
    %v176 = vld [vmem:[%s1 + $0xc] sm:$0xf]
    %v177 = vld [vmem:[%s10] sm:$0x1]
    %v179 = vperm.slane %v177, 0
    %v185 = vunpack.c.l.b16 %v173
    %v186 = vunpack.c.l.b16 %v174
    %v187 = vunpack.c.l.b16 %v175
    %v188 = vunpack.c.l.b16 %v176
    %v189 = vpack.c.b16 %v186, %v185
    %v190 = vpack.c.b16 %v188, %v187
    %vm193 = vcmask 261120
    %v195 = vsel %vm193, %v172, 0
    %197 = vmatpush.bf16.msra.mxu0 0
    %198 = vmatpush.bf16.msra.mxu0 0
    %199 = vmatpush.bf16.msra.mxu0 0
    %200 = vmatpush.bf16.msra.mxu0 0
    %201 = vmatpush.bf16.msra.mxu0 0
    %202 = vmatpush.bf16.msra.mxu0 0
    %203 = vmatpush.bf16.msra.mxu0 %v190
    %204 = vmatpush.bf16.msra.mxu0 %v189
    %205 = vmatmul.bf16.gmra.mxu0 %v195
    %v206 = vpop.f32.mrf.mxu0
    %v207 = vadd.f32 %v179, %v206
    %v208 = vpop.f32.mrf.mxu0
    %209 = vdwg.mxu0
    %v210 = vlaneseq
    %v211 = vshrl.u32 %v210, 7
    %vm212 = vcmp.lt.s32.totalorder %v211, 0
    %v213 = vsub.s32 0, %v211
    %v214 = vsel %vm212, %v213, %v211
    %v215 = vshrl.u32 %v214, 2
    %v216 = vand.u32 %v214, 3
    %v217 = vsub.s32 0, %v216
    %v218 = vsel %vm212, %v217, %v216
    %vm219 = vcmp.ne.s32.totalorder %v218, 0
    %vm220 = vcmp.lt.s32.totalorder %v218, 0
    %vm221 = vmand %vm220, %vm219
    %v222 = vadd.s32 %v218, 4
    %v223 = vsel %vm221, %v222, %v218
    %v224 = vpack.c.bf16 %v207, %v207
    %vm225 = vcmp.eq.s32.totalorder %v223, 0
    %vm226 = vmpackc.low %vm225, %vm225
    %v227 = vsel %vm226, %v224, 0
    %vm228 = vcmp.eq.s32.totalorder %v223, 1
    %vm229 = vmpackc.low %vm228, %vm228
    %v230 = vsel %vm229, %v224, 0
    %vm231 = vcmp.eq.s32.totalorder %v223, 2
    %vm232 = vmpackc.low %vm231, %vm231
    %v233 = vsel %vm232, %v224, 0
    %vm234 = vcmp.eq.s32.totalorder %v223, 3
    %vm235 = vmpackc.low %vm234, %vm234
    %v236 = vsel %vm235, %v224, 0
    %v237 = vld [vmem:[#allocation2] sm:$0xf]
    %v238 = vld [vmem:[#allocation2 + $0x4] sm:$0xf]
    %v239 = vld [vmem:[#allocation2 + $0x8] sm:$0xf]
    %v240 = vld [vmem:[#allocation2 + $0xc] sm:$0xf]
    %v241 = vld [vmem:[#allocation2 + $0x10] sm:$0xf]
    %v242 = vld [vmem:[#allocation2 + $0x14] sm:$0xf]
    %v243 = vld [vmem:[#allocation2 + $0x18] sm:$0xf]
    %v244 = vld [vmem:[#allocation2 + $0x1c] sm:$0xf]
    %v245 = vld [vmem:[#allocation2 + $0x20] sm:$0xf]
    %v246 = vld [vmem:[#allocation2 + $0x24] sm:$0xf]
    %v247 = vld [vmem:[#allocation2 + $0x28] sm:$0xf]
    %v248 = vld [vmem:[#allocation2 + $0x2c] sm:$0xf]
    %v249 = vld [vmem:[#allocation2 + $0x30] sm:$0xf]
    %v250 = vld [vmem:[#allocation2 + $0x34] sm:$0xf]
    %v251 = vld [vmem:[#allocation2 + $0x38] sm:$0xf]
    %v252 = vld [vmem:[#allocation2 + $0x3c] sm:$0xf]
    %v253 = vld [vmem:[#allocation2 + $0x40] sm:$0xf]
    %v254 = vld [vmem:[#allocation2 + $0x44] sm:$0xf]
    %v255 = vld [vmem:[#allocation2 + $0x48] sm:$0xf]
    %v256 = vld [vmem:[#allocation2 + $0x4c] sm:$0xf]
    %v257 = vld [vmem:[#allocation2 + $0x50] sm:$0xf]
    %v258 = vld [vmem:[#allocation2 + $0x54] sm:$0xf]
    %v259 = vld [vmem:[#allocation2 + $0x58] sm:$0xf]
    %v260 = vld [vmem:[#allocation2 + $0x5c] sm:$0xf]
    %v261 = vld [vmem:[#allocation2 + $0x60] sm:$0xf]
    %v262 = vld [vmem:[#allocation2 + $0x64] sm:$0xf]
    %v263 = vld [vmem:[#allocation2 + $0x68] sm:$0xf]
    %v264 = vld [vmem:[#allocation2 + $0x6c] sm:$0xf]
    %v265 = vld [vmem:[#allocation2 + $0x70] sm:$0xf]
    %v266 = vld [vmem:[#allocation2 + $0x74] sm:$0xf]
    %v267 = vld [vmem:[#allocation2 + $0x78] sm:$0xf]
    %v268 = vld [vmem:[#allocation2 + $0x7c] sm:$0xf]
    %v269 = vld [vmem:[#allocation2 + $0x80] sm:$0xf]
    %v270 = vld [vmem:[#allocation2 + $0x84] sm:$0xf]
    %v271 = vld [vmem:[#allocation2 + $0x88] sm:$0xf]
    %v272 = vld [vmem:[#allocation2 + $0x8c] sm:$0xf]
    %v273 = vld [vmem:[#allocation2 + $0x90] sm:$0xf]
    %v274 = vld [vmem:[#allocation2 + $0x94] sm:$0xf]
    %v275 = vld [vmem:[#allocation2 + $0x98] sm:$0xf]
    %v276 = vld [vmem:[#allocation2 + $0x9c] sm:$0xf]
    %v277 = vld [vmem:[#allocation2 + $0xa0] sm:$0xf]
    %v278 = vld [vmem:[#allocation2 + $0xa4] sm:$0xf]
    %v279 = vld [vmem:[#allocation2 + $0xa8] sm:$0xf]
    %v280 = vld [vmem:[#allocation2 + $0xac] sm:$0xf]
    %v281 = vld [vmem:[#allocation2 + $0xb0] sm:$0xf]
    %v282 = vld [vmem:[#allocation2 + $0xb4] sm:$0xf]
    %v283 = vld [vmem:[#allocation2 + $0xb8] sm:$0xf]
    %v284 = vld [vmem:[#allocation2 + $0xbc] sm:$0xf]
    %v285 = vld [vmem:[#allocation2 + $0xc0] sm:$0xf]
    %v286 = vld [vmem:[#allocation2 + $0xc4] sm:$0xf]
    %v287 = vld [vmem:[#allocation2 + $0xc8] sm:$0xf]
    %v288 = vld [vmem:[#allocation2 + $0xcc] sm:$0xf]
    %v289 = vld [vmem:[#allocation2 + $0xd0] sm:$0xf]
    %v290 = vld [vmem:[#allocation2 + $0xd4] sm:$0xf]
    %v291 = vld [vmem:[#allocation2 + $0xd8] sm:$0xf]
    %v292 = vld [vmem:[#allocation2 + $0xdc] sm:$0xf]
    %v293 = vld [vmem:[#allocation2 + $0xe0] sm:$0xf]
    %v294 = vld [vmem:[#allocation2 + $0xe4] sm:$0xf]
    %v295 = vld [vmem:[#allocation2 + $0xe8] sm:$0xf]
    %v296 = vld [vmem:[#allocation2 + $0xec] sm:$0xf]
    %v297 = vld [vmem:[#allocation2 + $0xf0] sm:$0xf]
    %v298 = vld [vmem:[#allocation2 + $0xf4] sm:$0xf]
    %v299 = vld [vmem:[#allocation2 + $0xf8] sm:$0xf]
    %v300 = vld [vmem:[#allocation2 + $0xfc] sm:$0xf]
    %v301 = vld [vmem:[%s11] sm:$0x1]
    %v303 = vperm.slane %v301, 0
    %v369 = vunpack.c.l.b16 %v237
    %v370 = vunpack.c.l.b16 %v238
    %v371 = vunpack.c.l.b16 %v239
    %v372 = vunpack.c.l.b16 %v240
    %v373 = vunpack.c.l.b16 %v241
    %v374 = vunpack.c.l.b16 %v242
    %v375 = vunpack.c.l.b16 %v243
    %v376 = vunpack.c.l.b16 %v244
    %v377 = vunpack.c.l.b16 %v245
    %v378 = vunpack.c.l.b16 %v246
    %v379 = vunpack.c.l.b16 %v247
    %v380 = vunpack.c.l.b16 %v248
    %v381 = vunpack.c.l.b16 %v249
    %v382 = vunpack.c.l.b16 %v250
    %v383 = vunpack.c.l.b16 %v251
    %v384 = vunpack.c.l.b16 %v252
    %v385 = vunpack.c.l.b16 %v253
    %v386 = vunpack.c.l.b16 %v254
    %v387 = vunpack.c.l.b16 %v255
    %v388 = vunpack.c.l.b16 %v256
    %v389 = vunpack.c.l.b16 %v257
    %v390 = vunpack.c.l.b16 %v258
    %v391 = vunpack.c.l.b16 %v259
    %v392 = vunpack.c.l.b16 %v260
    %v393 = vunpack.c.l.b16 %v261
    %v394 = vunpack.c.l.b16 %v262
    %v395 = vunpack.c.l.b16 %v263
    %v396 = vunpack.c.l.b16 %v264
    %v397 = vunpack.c.l.b16 %v265
    %v398 = vunpack.c.l.b16 %v266
    %v399 = vunpack.c.l.b16 %v267
    %v400 = vunpack.c.l.b16 %v268
    %v401 = vunpack.c.l.b16 %v269
    %v402 = vunpack.c.l.b16 %v270
    %v403 = vunpack.c.l.b16 %v271
    %v404 = vunpack.c.l.b16 %v272
    %v405 = vunpack.c.l.b16 %v273
    %v406 = vunpack.c.l.b16 %v274
    %v407 = vunpack.c.l.b16 %v275
    %v408 = vunpack.c.l.b16 %v276
    %v409 = vunpack.c.l.b16 %v277
    %v410 = vunpack.c.l.b16 %v278
    %v411 = vunpack.c.l.b16 %v279
    %v412 = vunpack.c.l.b16 %v280
    %v413 = vunpack.c.l.b16 %v281
    %v414 = vunpack.c.l.b16 %v282
    %v415 = vunpack.c.l.b16 %v283
    %v416 = vunpack.c.l.b16 %v284
    %v417 = vunpack.c.l.b16 %v285
    %v418 = vunpack.c.l.b16 %v286
    %v419 = vunpack.c.l.b16 %v287
    %v420 = vunpack.c.l.b16 %v288
    %v421 = vunpack.c.l.b16 %v289
    %v422 = vunpack.c.l.b16 %v290
    %v423 = vunpack.c.l.b16 %v291
    %v424 = vunpack.c.l.b16 %v292
    %v425 = vunpack.c.l.b16 %v293
    %v426 = vunpack.c.l.b16 %v294
    %v427 = vunpack.c.l.b16 %v295
    %v428 = vunpack.c.l.b16 %v296
    %v429 = vunpack.c.l.b16 %v297
    %v430 = vunpack.c.l.b16 %v298
    %v431 = vunpack.c.l.b16 %v299
    %v432 = vunpack.c.l.b16 %v300
    %v433 = vpack.c.b16 %v370, %v369
    %v434 = vpack.c.b16 %v372, %v371
    %v435 = vpack.c.b16 %v374, %v373
    %v436 = vpack.c.b16 %v376, %v375
    %v437 = vpack.c.b16 %v378, %v377
    %v438 = vpack.c.b16 %v380, %v379
    %v439 = vpack.c.b16 %v382, %v381
    %v440 = vpack.c.b16 %v384, %v383
    %v441 = vpack.c.b16 %v386, %v385
    %v442 = vpack.c.b16 %v388, %v387
    %v443 = vpack.c.b16 %v390, %v389
    %v444 = vpack.c.b16 %v392, %v391
    %v445 = vpack.c.b16 %v394, %v393
    %v446 = vpack.c.b16 %v396, %v395
    %v447 = vpack.c.b16 %v398, %v397
    %v448 = vpack.c.b16 %v400, %v399
    %v449 = vpack.c.b16 %v402, %v401
    %v450 = vpack.c.b16 %v404, %v403
    %v451 = vpack.c.b16 %v406, %v405
    %v452 = vpack.c.b16 %v408, %v407
    %v453 = vpack.c.b16 %v410, %v409
    %v454 = vpack.c.b16 %v412, %v411
    %v455 = vpack.c.b16 %v414, %v413
    %v456 = vpack.c.b16 %v416, %v415
    %v457 = vpack.c.b16 %v418, %v417
    %v458 = vpack.c.b16 %v420, %v419
    %v459 = vpack.c.b16 %v422, %v421
    %v460 = vpack.c.b16 %v424, %v423
    %v461 = vpack.c.b16 %v426, %v425
    %v462 = vpack.c.b16 %v428, %v427
    %v463 = vpack.c.b16 %v430, %v429
    %v464 = vpack.c.b16 %v432, %v431
    %497 = vmatpush.bf16.msra.mxu0 %v440
    %498 = vmatpush.bf16.msra.mxu0 %v439
    %499 = vmatpush.bf16.msra.mxu0 %v438
    %500 = vmatpush.bf16.msra.mxu0 %v437
    %501 = vmatpush.bf16.msra.mxu0 %v436
    %502 = vmatpush.bf16.msra.mxu0 %v435
    %503 = vmatpush.bf16.msra.mxu0 %v434
    %504 = vmatpush.bf16.msra.mxu0 %v433
    %505 = vmatmul.bf16.gmra.mxu0 %v227
    %v506 = vpop.f32.mrf.mxu0
    %v507 = vadd.f32 %v303, %v506
    %v508 = vpop.f32.mrf.mxu0
    %509 = vdwg.mxu0
    %510 = vmatpush.bf16.msra.mxu0 %v448
    %511 = vmatpush.bf16.msra.mxu0 %v447
    %512 = vmatpush.bf16.msra.mxu0 %v446
    %513 = vmatpush.bf16.msra.mxu0 %v445
    %514 = vmatpush.bf16.msra.mxu0 %v444
    %515 = vmatpush.bf16.msra.mxu0 %v443
    %516 = vmatpush.bf16.msra.mxu0 %v442
    %517 = vmatpush.bf16.msra.mxu0 %v441
    %518 = vmatmul.bf16.gmra.mxu0 %v230
    %v519 = vpop.f32.mrf.mxu0
    %v520 = vadd.f32 %v507, %v519
    %v521 = vpop.f32.mrf.mxu0
    %522 = vdwg.mxu0
    %523 = vmatpush.bf16.msra.mxu0 %v456
    %524 = vmatpush.bf16.msra.mxu0 %v455
    %525 = vmatpush.bf16.msra.mxu0 %v454
    %526 = vmatpush.bf16.msra.mxu0 %v453
    %527 = vmatpush.bf16.msra.mxu0 %v452
    %528 = vmatpush.bf16.msra.mxu0 %v451
    %529 = vmatpush.bf16.msra.mxu0 %v450
    %530 = vmatpush.bf16.msra.mxu0 %v449
    %531 = vmatmul.bf16.gmra.mxu0 %v233
    %v532 = vpop.f32.mrf.mxu0
    %v533 = vadd.f32 %v520, %v532
    %v534 = vpop.f32.mrf.mxu0
    %535 = vdwg.mxu0
    %536 = vmatpush.bf16.msra.mxu0 %v464
    %537 = vmatpush.bf16.msra.mxu0 %v463
    %538 = vmatpush.bf16.msra.mxu0 %v462
    %539 = vmatpush.bf16.msra.mxu0 %v461
    %540 = vmatpush.bf16.msra.mxu0 %v460
    %541 = vmatpush.bf16.msra.mxu0 %v459
    %542 = vmatpush.bf16.msra.mxu0 %v458
    %543 = vmatpush.bf16.msra.mxu0 %v457
    %544 = vmatmul.bf16.gmra.mxu0 %v236
    %v545 = vpop.f32.mrf.mxu0
    %v546 = vadd.f32 %v533, %v545
    %v547 = vpop.f32.mrf.mxu0
    %548 = vdwg.mxu0
    %v549 = vpack.c.bf16 %v546, %v546
    %v550 = vld [vmem:[%s3] sm:$0xf]
    %v551 = vld [vmem:[%s3 + $0x4] sm:$0xf]
    %v552 = vld [vmem:[%s3 + $0x8] sm:$0xf]
    %v553 = vld [vmem:[%s3 + $0xc] sm:$0xf]
    %v554 = vld [vmem:[%s3 + $0x10] sm:$0xf]
    %v555 = vld [vmem:[%s3 + $0x14] sm:$0xf]
    %v556 = vld [vmem:[%s3 + $0x18] sm:$0xf]
    %v557 = vld [vmem:[%s3 + $0x1c] sm:$0xf]
    %v558 = vld [vmem:[%s3 + $0x20] sm:$0xf]
    %v559 = vld [vmem:[%s3 + $0x24] sm:$0xf]
    %v560 = vld [vmem:[%s3 + $0x28] sm:$0xf]
    %v561 = vld [vmem:[%s3 + $0x2c] sm:$0xf]
    %v562 = vld [vmem:[%s3 + $0x30] sm:$0xf]
    %v563 = vld [vmem:[%s3 + $0x34] sm:$0xf]
    %v564 = vld [vmem:[%s3 + $0x38] sm:$0xf]
    %v565 = vld [vmem:[%s3 + $0x3c] sm:$0xf]
    %v566 = vld [vmem:[%s12] sm:$0x1]
    %v568 = vperm.slane %v566, 0
    %v586 = vunpack.c.l.b16 %v550
    %v587 = vunpack.c.l.b16 %v551
    %v588 = vunpack.c.l.b16 %v552
    %v589 = vunpack.c.l.b16 %v553
    %v590 = vunpack.c.l.b16 %v554
    %v591 = vunpack.c.l.b16 %v555
    %v592 = vunpack.c.l.b16 %v556
    %v593 = vunpack.c.l.b16 %v557
    %v594 = vunpack.c.l.b16 %v558
    %v595 = vunpack.c.l.b16 %v559
    %v596 = vunpack.c.l.b16 %v560
    %v597 = vunpack.c.l.b16 %v561
    %v598 = vunpack.c.l.b16 %v562
    %v599 = vunpack.c.l.b16 %v563
    %v600 = vunpack.c.l.b16 %v564
    %v601 = vunpack.c.l.b16 %v565
    %v602 = vpack.c.b16 %v587, %v586
    %v603 = vpack.c.b16 %v589, %v588
    %v604 = vpack.c.b16 %v591, %v590
    %v605 = vpack.c.b16 %v593, %v592
    %v606 = vpack.c.b16 %v595, %v594
    %v607 = vpack.c.b16 %v597, %v596
    %v608 = vpack.c.b16 %v599, %v598
    %v609 = vpack.c.b16 %v601, %v600
    %618 = vmatpush.bf16.msra.mxu0 %v609
    %619 = vmatpush.bf16.msra.mxu0 %v608
    %620 = vmatpush.bf16.msra.mxu0 %v607
    %621 = vmatpush.bf16.msra.mxu0 %v606
    %622 = vmatpush.bf16.msra.mxu0 %v605
    %623 = vmatpush.bf16.msra.mxu0 %v604
    %624 = vmatpush.bf16.msra.mxu0 %v603
    %625 = vmatpush.bf16.msra.mxu0 %v602
    %626 = vmatmul.bf16.gmra.mxu0 %v549
    %v627 = vpop.f32.mrf.mxu0
    %v628 = vadd.f32 %v568, %v627
    %v629 = vpop.f32.mrf.mxu0
    %630 = vdwg.mxu0
    %v631 = vpack.c.bf16 %v628, %v628
    %v632 = vld [vmem:[#allocation4] sm:$0xf]
    %v633 = vld [vmem:[#allocation4 + $0x4] sm:$0xf]
    %v634 = vld [vmem:[#allocation4 + $0x8] sm:$0xf]
    %v635 = vld [vmem:[#allocation4 + $0xc] sm:$0xf]
    %v636 = vld [vmem:[#allocation4 + $0x10] sm:$0xf]
    %v637 = vld [vmem:[#allocation4 + $0x14] sm:$0xf]
    %v638 = vld [vmem:[#allocation4 + $0x18] sm:$0xf]
    %v639 = vld [vmem:[#allocation4 + $0x1c] sm:$0xf]
    %v640 = vld [vmem:[#allocation4 + $0x20] sm:$0xf]
    %v641 = vld [vmem:[#allocation4 + $0x24] sm:$0xf]
    %v642 = vld [vmem:[#allocation4 + $0x28] sm:$0xf]
    %v643 = vld [vmem:[#allocation4 + $0x2c] sm:$0xf]
    %v644 = vld [vmem:[#allocation4 + $0x30] sm:$0xf]
    %v645 = vld [vmem:[#allocation4 + $0x34] sm:$0xf]
    %v646 = vld [vmem:[#allocation4 + $0x38] sm:$0xf]
    %v647 = vld [vmem:[#allocation4 + $0x3c] sm:$0xf]
    %v648 = vld [vmem:[%s13] sm:$0x1]
    %v650 = vperm.slane %v648, 0
    %v668 = vunpack.c.l.b16 %v632
    %v669 = vunpack.c.l.b16 %v633
    %v670 = vunpack.c.l.b16 %v634
    %v671 = vunpack.c.l.b16 %v635
    %v672 = vunpack.c.l.b16 %v636
    %v673 = vunpack.c.l.b16 %v637
    %v674 = vunpack.c.l.b16 %v638
    %v675 = vunpack.c.l.b16 %v639
    %v676 = vunpack.c.l.b16 %v640
    %v677 = vunpack.c.l.b16 %v641
    %v678 = vunpack.c.l.b16 %v642
    %v679 = vunpack.c.l.b16 %v643
    %v680 = vunpack.c.l.b16 %v644
    %v681 = vunpack.c.l.b16 %v645
    %v682 = vunpack.c.l.b16 %v646
    %v683 = vunpack.c.l.b16 %v647
    %v684 = vpack.c.b16 %v669, %v668
    %v685 = vpack.c.b16 %v671, %v670
    %v686 = vpack.c.b16 %v673, %v672
    %v687 = vpack.c.b16 %v675, %v674
    %v688 = vpack.c.b16 %v677, %v676
    %v689 = vpack.c.b16 %v679, %v678
    %v690 = vpack.c.b16 %v681, %v680
    %v691 = vpack.c.b16 %v683, %v682
    %700 = vmatpush.bf16.msra.mxu0 %v691
    %701 = vmatpush.bf16.msra.mxu0 %v690
    %702 = vmatpush.bf16.msra.mxu0 %v689
    %703 = vmatpush.bf16.msra.mxu0 %v688
    %704 = vmatpush.bf16.msra.mxu0 %v687
    %705 = vmatpush.bf16.msra.mxu0 %v686
    %706 = vmatpush.bf16.msra.mxu0 %v685
    %707 = vmatpush.bf16.msra.mxu0 %v684
    %708 = vmatmul.bf16.gmra.mxu0 %v631
    %v709 = vpop.f32.mrf.mxu0
    %v710 = vadd.f32 %v650, %v709
    %v711 = vpop.f32.mrf.mxu0
    %712 = vdwg.mxu0
    %v713 = vpack.c.bf16 %v710, %v710
    %v714 = vld [vmem:[#allocation6] sm:$0xf]
    %v715 = vld [vmem:[#allocation6 + $0x4] sm:$0xf]
    %v716 = vld [vmem:[#allocation6 + $0x8] sm:$0xf]
    %v717 = vld [vmem:[#allocation6 + $0xc] sm:$0xf]
    %v718 = vld [vmem:[#allocation6 + $0x10] sm:$0xf]
    %v719 = vld [vmem:[#allocation6 + $0x14] sm:$0xf]
    %v720 = vld [vmem:[#allocation6 + $0x18] sm:$0xf]
    %v721 = vld [vmem:[#allocation6 + $0x1c] sm:$0xf]
    %v722 = vld [vmem:[#allocation6 + $0x20] sm:$0xf]
    %v723 = vld [vmem:[#allocation6 + $0x24] sm:$0xf]
    %v724 = vld [vmem:[#allocation6 + $0x28] sm:$0xf]
    %v725 = vld [vmem:[#allocation6 + $0x2c] sm:$0xf]
    %v726 = vld [vmem:[#allocation6 + $0x30] sm:$0xf]
    %v727 = vld [vmem:[#allocation6 + $0x34] sm:$0xf]
    %v728 = vld [vmem:[#allocation6 + $0x38] sm:$0xf]
    %v729 = vld [vmem:[#allocation6 + $0x3c] sm:$0xf]
    %v730 = vld [vmem:[%s14] sm:$0x1]
    %v732 = vperm.slane %v730, 0
    %v750 = vunpack.c.l.b16 %v714
    %v751 = vunpack.c.l.b16 %v715
    %v752 = vunpack.c.l.b16 %v716
    %v753 = vunpack.c.l.b16 %v717
    %v754 = vunpack.c.l.b16 %v718
    %v755 = vunpack.c.l.b16 %v719
    %v756 = vunpack.c.l.b16 %v720
    %v757 = vunpack.c.l.b16 %v721
    %v758 = vunpack.c.l.b16 %v722
    %v759 = vunpack.c.l.b16 %v723
    %v760 = vunpack.c.l.b16 %v724
    %v761 = vunpack.c.l.b16 %v725
    %v762 = vunpack.c.l.b16 %v726
    %v763 = vunpack.c.l.b16 %v727
    %v764 = vunpack.c.l.b16 %v728
    %v765 = vunpack.c.l.b16 %v729
    %v766 = vpack.c.b16 %v751, %v750
    %v767 = vpack.c.b16 %v753, %v752
    %v768 = vpack.c.b16 %v755, %v754
    %v769 = vpack.c.b16 %v757, %v756
    %v770 = vpack.c.b16 %v759, %v758
    %v771 = vpack.c.b16 %v761, %v760
    %v772 = vpack.c.b16 %v763, %v762
    %v773 = vpack.c.b16 %v765, %v764
    %782 = vmatpush.bf16.msra.mxu0 %v773
    %783 = vmatpush.bf16.msra.mxu0 %v772
    %784 = vmatpush.bf16.msra.mxu0 %v771
    %785 = vmatpush.bf16.msra.mxu0 %v770
    %786 = vmatpush.bf16.msra.mxu0 %v769
    %787 = vmatpush.bf16.msra.mxu0 %v768
    %788 = vmatpush.bf16.msra.mxu0 %v767
    %789 = vmatpush.bf16.msra.mxu0 %v766
    %790 = vmatmul.bf16.gmra.mxu0 %v713
    %v791 = vpop.f32.mrf.mxu0
    %v792 = vadd.f32 %v732, %v791
    %v793 = vpop.f32.mrf.mxu0
    %794 = vdwg.mxu0
    %v795 = vadd.f32 %v207, %v546
    %v796 = vpack.c.bf16 %v795, %v795
    %v797 = vpack.c.bf16 %v792, %v792
    %v798 = vld [vmem:[#allocation7] sm:$0xff]
    %v799 = vld [vmem:[#allocation7 + $0x8] sm:$0xff]
    %v800 = vld [vmem:[#allocation7 + $0x10] sm:$0xff]
    %v801 = vld [vmem:[#allocation7 + $0x18] sm:$0xff]
    %v802 = vld [vmem:[#allocation7 + $0x20] sm:$0xff]
    %v803 = vld [vmem:[#allocation7 + $0x28] sm:$0xff]
    %v804 = vld [vmem:[#allocation7 + $0x30] sm:$0xff]
    %v805 = vld [vmem:[#allocation7 + $0x38] sm:$0xff]
    %v806 = vld [vmem:[#allocation7 + $0x40] sm:$0xff]
    %v807 = vld [vmem:[#allocation7 + $0x48] sm:$0xff]
    %v808 = vld [vmem:[#allocation7 + $0x50] sm:$0xff]
    %v809 = vld [vmem:[#allocation7 + $0x58] sm:$0xff]
    %v810 = vld [vmem:[#allocation7 + $0x60] sm:$0xff]
    %v811 = vld [vmem:[#allocation7 + $0x68] sm:$0xff]
    %v812 = vld [vmem:[#allocation7 + $0x70] sm:$0xff]
    %v813 = vld [vmem:[#allocation7 + $0x78] sm:$0xff]
    %v814 = vld [vmem:[#allocation7 + $0x80] sm:$0xff]
    %v815 = vld [vmem:[#allocation7 + $0x88] sm:$0xff]
    %v816 = vld [vmem:[#allocation7 + $0x90] sm:$0xff]
    %v817 = vld [vmem:[#allocation7 + $0x98] sm:$0xff]
    %v818 = vld [vmem:[#allocation7 + $0xa0] sm:$0xff]
    %v819 = vld [vmem:[#allocation7 + $0xa8] sm:$0xff]
    %v820 = vld [vmem:[#allocation7 + $0xb0] sm:$0xff]
    %v821 = vld [vmem:[#allocation7 + $0xb8] sm:$0xff]
    %v822 = vld [vmem:[#allocation7 + $0xc0] sm:$0xff]
    %v823 = vld [vmem:[#allocation7 + $0xc8] sm:$0xff]
    %v824 = vld [vmem:[#allocation7 + $0xd0] sm:$0xff]
    %v825 = vld [vmem:[#allocation7 + $0xd8] sm:$0xff]
    %v826 = vld [vmem:[#allocation7 + $0xe0] sm:$0xff]
    %v827 = vld [vmem:[#allocation7 + $0xe8] sm:$0xff]
    %v828 = vld [vmem:[#allocation7 + $0xf0] sm:$0xff]
    %v829 = vld [vmem:[#allocation7 + $0xf8] sm:$0xff]
    %v830 = vld [vmem:[#allocation7 + $0x100] sm:$0xff]
    %v831 = vld [vmem:[#allocation7 + $0x108] sm:$0xff]
    %v832 = vld [vmem:[#allocation7 + $0x110] sm:$0xff]
    %v833 = vld [vmem:[#allocation7 + $0x118] sm:$0xff]
    %v834 = vld [vmem:[#allocation7 + $0x120] sm:$0xff]
    %v835 = vld [vmem:[#allocation7 + $0x128] sm:$0xff]
    %v836 = vld [vmem:[#allocation7 + $0x130] sm:$0xff]
    %v837 = vld [vmem:[#allocation7 + $0x138] sm:$0xff]
    %v838 = vld [vmem:[#allocation7 + $0x140] sm:$0xff]
    %v839 = vld [vmem:[#allocation7 + $0x148] sm:$0xff]
    %v840 = vld [vmem:[#allocation7 + $0x150] sm:$0xff]
    %v841 = vld [vmem:[#allocation7 + $0x158] sm:$0xff]
    %v842 = vld [vmem:[#allocation7 + $0x160] sm:$0xff]
    %v843 = vld [vmem:[#allocation7 + $0x168] sm:$0xff]
    %v844 = vld [vmem:[#allocation7 + $0x170] sm:$0xff]
    %v845 = vld [vmem:[#allocation7 + $0x178] sm:$0xff]
    %v846 = vld [vmem:[#allocation7 + $0x180] sm:$0xff]
    %v847 = vld [vmem:[#allocation7 + $0x188] sm:$0xff]
    %v848 = vld [vmem:[#allocation7 + $0x190] sm:$0xff]
    %v849 = vld [vmem:[#allocation7 + $0x198] sm:$0xff]
    %v850 = vld [vmem:[#allocation7 + $0x1a0] sm:$0xff]
    %v851 = vld [vmem:[#allocation7 + $0x1a8] sm:$0xff]
    %v852 = vld [vmem:[#allocation7 + $0x1b0] sm:$0xff]
    %v853 = vld [vmem:[#allocation7 + $0x1b8] sm:$0xff]
    %v854 = vld [vmem:[#allocation7 + $0x1c0] sm:$0xff]
    %v855 = vld [vmem:[#allocation7 + $0x1c8] sm:$0xff]
    %v856 = vld [vmem:[#allocation7 + $0x1d0] sm:$0xff]
    %v857 = vld [vmem:[#allocation7 + $0x1d8] sm:$0xff]
    %v858 = vld [vmem:[#allocation7 + $0x1e0] sm:$0xff]
    %v859 = vld [vmem:[#allocation7 + $0x1e8] sm:$0xff]
    %v860 = vld [vmem:[#allocation7 + $0x1f0] sm:$0xff]
    %v861 = vld [vmem:[#allocation7 + $0x1f8] sm:$0xff]
    %v862 = vld [vmem:[%s15] sm:$0x3]
    %v864 = vperm.slane %v862, 0
    %v865 = vperm.slane %v862, 1
    %v932 = vunpack.c.l.b16 %v798
    %v933 = vunpack.c.h.b16 %v798
    %v934 = vunpack.c.l.b16 %v799
    %v935 = vunpack.c.h.b16 %v799
    %v936 = vunpack.c.l.b16 %v800
    %v937 = vunpack.c.h.b16 %v800
    %v938 = vunpack.c.l.b16 %v801
    %v939 = vunpack.c.h.b16 %v801
    %v940 = vunpack.c.l.b16 %v802
    %v941 = vunpack.c.h.b16 %v802
    %v942 = vunpack.c.l.b16 %v803
    %v943 = vunpack.c.h.b16 %v803
    %v944 = vunpack.c.l.b16 %v804
    %v945 = vunpack.c.h.b16 %v804
    %v946 = vunpack.c.l.b16 %v805
    %v947 = vunpack.c.h.b16 %v805
    %v948 = vunpack.c.l.b16 %v806
    %v949 = vunpack.c.h.b16 %v806
    %v950 = vunpack.c.l.b16 %v807
    %v951 = vunpack.c.h.b16 %v807
    %v952 = vunpack.c.l.b16 %v808
    %v953 = vunpack.c.h.b16 %v808
    %v954 = vunpack.c.l.b16 %v809
    %v955 = vunpack.c.h.b16 %v809
    %v956 = vunpack.c.l.b16 %v810
    %v957 = vunpack.c.h.b16 %v810
    %v958 = vunpack.c.l.b16 %v811
    %v959 = vunpack.c.h.b16 %v811
    %v960 = vunpack.c.l.b16 %v812
    %v961 = vunpack.c.h.b16 %v812
    %v962 = vunpack.c.l.b16 %v813
    %v963 = vunpack.c.h.b16 %v813
    %v964 = vunpack.c.l.b16 %v814
    %v965 = vunpack.c.h.b16 %v814
    %v966 = vunpack.c.l.b16 %v815
    %v967 = vunpack.c.h.b16 %v815
    %v968 = vunpack.c.l.b16 %v816
    %v969 = vunpack.c.h.b16 %v816
    %v970 = vunpack.c.l.b16 %v817
    %v971 = vunpack.c.h.b16 %v817
    %v972 = vunpack.c.l.b16 %v818
    %v973 = vunpack.c.h.b16 %v818
    %v974 = vunpack.c.l.b16 %v819
    %v975 = vunpack.c.h.b16 %v819
    %v976 = vunpack.c.l.b16 %v820
    %v977 = vunpack.c.h.b16 %v820
    %v978 = vunpack.c.l.b16 %v821
    %v979 = vunpack.c.h.b16 %v821
    %v980 = vunpack.c.l.b16 %v822
    %v981 = vunpack.c.h.b16 %v822
    %v982 = vunpack.c.l.b16 %v823
    %v983 = vunpack.c.h.b16 %v823
    %v984 = vunpack.c.l.b16 %v824
    %v985 = vunpack.c.h.b16 %v824
    %v986 = vunpack.c.l.b16 %v825
    %v987 = vunpack.c.h.b16 %v825
    %v988 = vunpack.c.l.b16 %v826
    %v989 = vunpack.c.h.b16 %v826
    %v990 = vunpack.c.l.b16 %v827
    %v991 = vunpack.c.h.b16 %v827
    %v992 = vunpack.c.l.b16 %v828
    %v993 = vunpack.c.h.b16 %v828
    %v994 = vunpack.c.l.b16 %v829
    %v995 = vunpack.c.h.b16 %v829
    %v996 = vunpack.c.l.b16 %v830
    %v997 = vunpack.c.h.b16 %v830
    %v998 = vunpack.c.l.b16 %v831
    %v999 = vunpack.c.h.b16 %v831
    %v1000 = vunpack.c.l.b16 %v832
    %v1001 = vunpack.c.h.b16 %v832
    %v1002 = vunpack.c.l.b16 %v833
    %v1003 = vunpack.c.h.b16 %v833
    %v1004 = vunpack.c.l.b16 %v834
    %v1005 = vunpack.c.h.b16 %v834
    %v1006 = vunpack.c.l.b16 %v835
    %v1007 = vunpack.c.h.b16 %v835
    %v1008 = vunpack.c.l.b16 %v836
    %v1009 = vunpack.c.h.b16 %v836
    %v1010 = vunpack.c.l.b16 %v837
    %v1011 = vunpack.c.h.b16 %v837
    %v1012 = vunpack.c.l.b16 %v838
    %v1013 = vunpack.c.h.b16 %v838
    %v1014 = vunpack.c.l.b16 %v839
    %v1015 = vunpack.c.h.b16 %v839
    %v1016 = vunpack.c.l.b16 %v840
    %v1017 = vunpack.c.h.b16 %v840
    %v1018 = vunpack.c.l.b16 %v841
    %v1019 = vunpack.c.h.b16 %v841
    %v1020 = vunpack.c.l.b16 %v842
    %v1021 = vunpack.c.h.b16 %v842
    %v1022 = vunpack.c.l.b16 %v843
    %v1023 = vunpack.c.h.b16 %v843
    %v1024 = vunpack.c.l.b16 %v844
    %v1025 = vunpack.c.h.b16 %v844
    %v1026 = vunpack.c.l.b16 %v845
    %v1027 = vunpack.c.h.b16 %v845
    %v1028 = vunpack.c.l.b16 %v846
    %v1029 = vunpack.c.h.b16 %v846
    %v1030 = vunpack.c.l.b16 %v847
    %v1031 = vunpack.c.h.b16 %v847
    %v1032 = vunpack.c.l.b16 %v848
    %v1033 = vunpack.c.h.b16 %v848
    %v1034 = vunpack.c.l.b16 %v849
    %v1035 = vunpack.c.h.b16 %v849
    %v1036 = vunpack.c.l.b16 %v850
    %v1037 = vunpack.c.h.b16 %v850
    %v1038 = vunpack.c.l.b16 %v851
    %v1039 = vunpack.c.h.b16 %v851
    %v1040 = vunpack.c.l.b16 %v852
    %v1041 = vunpack.c.h.b16 %v852
    %v1042 = vunpack.c.l.b16 %v853
    %v1043 = vunpack.c.h.b16 %v853
    %v1044 = vunpack.c.l.b16 %v854
    %v1045 = vunpack.c.h.b16 %v854
    %v1046 = vunpack.c.l.b16 %v855
    %v1047 = vunpack.c.h.b16 %v855
    %v1048 = vunpack.c.l.b16 %v856
    %v1049 = vunpack.c.h.b16 %v856
    %v1050 = vunpack.c.l.b16 %v857
    %v1051 = vunpack.c.h.b16 %v857
    %v1052 = vunpack.c.l.b16 %v858
    %v1053 = vunpack.c.h.b16 %v858
    %v1054 = vunpack.c.l.b16 %v859
    %v1055 = vunpack.c.h.b16 %v859
    %v1056 = vunpack.c.l.b16 %v860
    %v1057 = vunpack.c.h.b16 %v860
    %v1058 = vunpack.c.l.b16 %v861
    %v1059 = vunpack.c.h.b16 %v861
    %v1060 = vpack.c.b16 %v934, %v932
    %v1061 = vpack.c.b16 %v935, %v933
    %v1062 = vpack.c.b16 %v938, %v936
    %v1063 = vpack.c.b16 %v939, %v937
    %v1064 = vpack.c.b16 %v942, %v940
    %v1065 = vpack.c.b16 %v943, %v941
    %v1066 = vpack.c.b16 %v946, %v944
    %v1067 = vpack.c.b16 %v947, %v945
    %v1068 = vpack.c.b16 %v950, %v948
    %v1069 = vpack.c.b16 %v951, %v949
    %v1070 = vpack.c.b16 %v954, %v952
    %v1071 = vpack.c.b16 %v955, %v953
    %v1072 = vpack.c.b16 %v958, %v956
    %v1073 = vpack.c.b16 %v959, %v957
    %v1074 = vpack.c.b16 %v962, %v960
    %v1075 = vpack.c.b16 %v963, %v961
    %v1076 = vpack.c.b16 %v966, %v964
    %v1077 = vpack.c.b16 %v967, %v965
    %v1078 = vpack.c.b16 %v970, %v968
    %v1079 = vpack.c.b16 %v971, %v969
    %v1080 = vpack.c.b16 %v974, %v972
    %v1081 = vpack.c.b16 %v975, %v973
    %v1082 = vpack.c.b16 %v978, %v976
    %v1083 = vpack.c.b16 %v979, %v977
    %v1084 = vpack.c.b16 %v982, %v980
    %v1085 = vpack.c.b16 %v983, %v981
    %v1086 = vpack.c.b16 %v986, %v984
    %v1087 = vpack.c.b16 %v987, %v985
    %v1088 = vpack.c.b16 %v990, %v988
    %v1089 = vpack.c.b16 %v991, %v989
    %v1090 = vpack.c.b16 %v994, %v992
    %v1091 = vpack.c.b16 %v995, %v993
    %v1092 = vpack.c.b16 %v998, %v996
    %v1093 = vpack.c.b16 %v999, %v997
    %v1094 = vpack.c.b16 %v1002, %v1000
    %v1095 = vpack.c.b16 %v1003, %v1001
    %v1096 = vpack.c.b16 %v1006, %v1004
    %v1097 = vpack.c.b16 %v1007, %v1005
    %v1098 = vpack.c.b16 %v1010, %v1008
    %v1099 = vpack.c.b16 %v1011, %v1009
    %v1100 = vpack.c.b16 %v1014, %v1012
    %v1101 = vpack.c.b16 %v1015, %v1013
    %v1102 = vpack.c.b16 %v1018, %v1016
    %v1103 = vpack.c.b16 %v1019, %v1017
    %v1104 = vpack.c.b16 %v1022, %v1020
    %v1105 = vpack.c.b16 %v1023, %v1021
    %v1106 = vpack.c.b16 %v1026, %v1024
    %v1107 = vpack.c.b16 %v1027, %v1025
    %v1108 = vpack.c.b16 %v1030, %v1028
    %v1109 = vpack.c.b16 %v1031, %v1029
    %v1110 = vpack.c.b16 %v1034, %v1032
    %v1111 = vpack.c.b16 %v1035, %v1033
    %v1112 = vpack.c.b16 %v1038, %v1036
    %v1113 = vpack.c.b16 %v1039, %v1037
    %v1114 = vpack.c.b16 %v1042, %v1040
    %v1115 = vpack.c.b16 %v1043, %v1041
    %v1116 = vpack.c.b16 %v1046, %v1044
    %v1117 = vpack.c.b16 %v1047, %v1045
    %v1118 = vpack.c.b16 %v1050, %v1048
    %v1119 = vpack.c.b16 %v1051, %v1049
    %v1120 = vpack.c.b16 %v1054, %v1052
    %v1121 = vpack.c.b16 %v1055, %v1053
    %v1122 = vpack.c.b16 %v1058, %v1056
    %v1123 = vpack.c.b16 %v1059, %v1057
    %1188 = vmatpush.bf16.msra.mxu0 %v1074
    %1189 = vmatpush.bf16.msra.mxu0 %v1072
    %1190 = vmatpush.bf16.msra.mxu0 %v1070
    %1191 = vmatpush.bf16.msra.mxu0 %v1068
    %1192 = vmatpush.bf16.msra.mxu0 %v1066
    %1193 = vmatpush.bf16.msra.mxu0 %v1064
    %1194 = vmatpush.bf16.msra.mxu0 %v1062
    %1195 = vmatpush.bf16.msra.mxu0 %v1060
    %1196 = vmatmul.bf16.gmra.mxu0 %v796
    %v1197 = vpop.f32.mrf.mxu0
    %v1198 = vadd.f32 %v864, %v1197
    %v1199 = vpop.f32.mrf.mxu0
    %1200 = vdwg.mxu0
    %1201 = vmatpush.bf16.msra.mxu0 %v1090
    %1202 = vmatpush.bf16.msra.mxu0 %v1088
    %1203 = vmatpush.bf16.msra.mxu0 %v1086
    %1204 = vmatpush.bf16.msra.mxu0 %v1084
    %1205 = vmatpush.bf16.msra.mxu0 %v1082
    %1206 = vmatpush.bf16.msra.mxu0 %v1080
    %1207 = vmatpush.bf16.msra.mxu0 %v1078
    %1208 = vmatpush.bf16.msra.mxu0 %v1076
    %1209 = vmatmul.bf16.gmra.mxu0 %v631
    %v1210 = vpop.f32.mrf.mxu0
    %v1211 = vadd.f32 %v1198, %v1210
    %v1212 = vpop.f32.mrf.mxu0
    %1213 = vdwg.mxu0
    %1214 = vmatpush.bf16.msra.mxu0 %v1106
    %1215 = vmatpush.bf16.msra.mxu0 %v1104
    %1216 = vmatpush.bf16.msra.mxu0 %v1102
    %1217 = vmatpush.bf16.msra.mxu0 %v1100
    %1218 = vmatpush.bf16.msra.mxu0 %v1098
    %1219 = vmatpush.bf16.msra.mxu0 %v1096
    %1220 = vmatpush.bf16.msra.mxu0 %v1094
    %1221 = vmatpush.bf16.msra.mxu0 %v1092
    %1222 = vmatmul.bf16.gmra.mxu0 %v713
    %v1223 = vpop.f32.mrf.mxu0
    %v1224 = vadd.f32 %v1211, %v1223
    %v1225 = vpop.f32.mrf.mxu0
    %1226 = vdwg.mxu0
    %1227 = vmatpush.bf16.msra.mxu0 %v1122
    %1228 = vmatpush.bf16.msra.mxu0 %v1120
    %1229 = vmatpush.bf16.msra.mxu0 %v1118
    %1230 = vmatpush.bf16.msra.mxu0 %v1116
    %1231 = vmatpush.bf16.msra.mxu0 %v1114
    %1232 = vmatpush.bf16.msra.mxu0 %v1112
    %1233 = vmatpush.bf16.msra.mxu0 %v1110
    %1234 = vmatpush.bf16.msra.mxu0 %v1108
    %1235 = vmatmul.bf16.gmra.mxu0 %v797
    %v1236 = vpop.f32.mrf.mxu0
    %v1237 = vadd.f32 %v1224, %v1236
    %v1238 = vpop.f32.mrf.mxu0
    %1239 = vdwg.mxu0
    %1240 = vmatpush.bf16.msra.mxu0 %v1075
    %1241 = vmatpush.bf16.msra.mxu0 %v1073
    %1242 = vmatpush.bf16.msra.mxu0 %v1071
    %1243 = vmatpush.bf16.msra.mxu0 %v1069
    %1244 = vmatpush.bf16.msra.mxu0 %v1067
    %1245 = vmatpush.bf16.msra.mxu0 %v1065
    %1246 = vmatpush.bf16.msra.mxu0 %v1063
    %1247 = vmatpush.bf16.msra.mxu0 %v1061
    %1248 = vmatmul.bf16.gmra.mxu0 %v796
    %v1249 = vpop.f32.mrf.mxu0
    %v1250 = vadd.f32 %v865, %v1249
    %v1251 = vpop.f32.mrf.mxu0
    %1252 = vdwg.mxu0
    %1253 = vmatpush.bf16.msra.mxu0 %v1091
    %1254 = vmatpush.bf16.msra.mxu0 %v1089
    %1255 = vmatpush.bf16.msra.mxu0 %v1087
    %1256 = vmatpush.bf16.msra.mxu0 %v1085
    %1257 = vmatpush.bf16.msra.mxu0 %v1083
    %1258 = vmatpush.bf16.msra.mxu0 %v1081
    %1259 = vmatpush.bf16.msra.mxu0 %v1079
    %1260 = vmatpush.bf16.msra.mxu0 %v1077
    %1261 = vmatmul.bf16.gmra.mxu0 %v631
    %v1262 = vpop.f32.mrf.mxu0
    %v1263 = vadd.f32 %v1250, %v1262
    %v1264 = vpop.f32.mrf.mxu0
    %1265 = vdwg.mxu0
    %1266 = vmatpush.bf16.msra.mxu0 %v1107
    %1267 = vmatpush.bf16.msra.mxu0 %v1105
    %1268 = vmatpush.bf16.msra.mxu0 %v1103
    %1269 = vmatpush.bf16.msra.mxu0 %v1101
    %1270 = vmatpush.bf16.msra.mxu0 %v1099
    %1271 = vmatpush.bf16.msra.mxu0 %v1097
    %1272 = vmatpush.bf16.msra.mxu0 %v1095
    %1273 = vmatpush.bf16.msra.mxu0 %v1093
    %1274 = vmatmul.bf16.gmra.mxu0 %v713
    %v1275 = vpop.f32.mrf.mxu0
    %v1276 = vadd.f32 %v1263, %v1275
    %v1277 = vpop.f32.mrf.mxu0
    %1278 = vdwg.mxu0
    %1279 = vmatpush.bf16.msra.mxu0 %v1123
    %1280 = vmatpush.bf16.msra.mxu0 %v1121
    %1281 = vmatpush.bf16.msra.mxu0 %v1119
    %1282 = vmatpush.bf16.msra.mxu0 %v1117
    %1283 = vmatpush.bf16.msra.mxu0 %v1115
    %1284 = vmatpush.bf16.msra.mxu0 %v1113
    %1285 = vmatpush.bf16.msra.mxu0 %v1111
    %1286 = vmatpush.bf16.msra.mxu0 %v1109
    %1287 = vmatmul.bf16.gmra.mxu0 %v797
    %v1288 = vpop.f32.mrf.mxu0
    %v1289 = vadd.f32 %v1276, %v1288
    %v1290 = vpop.f32.mrf.mxu0
    %1291 = vdwg.mxu0
    %v1292 = vpack.c.bf16 %v1237, %v1237
    %v1293 = vpack.c.bf16 %v1289, %v1289
    %v1294 = vld [vmem:[#allocation9] sm:$0xff]
    %v1295 = vld [vmem:[#allocation9 + $0x8] sm:$0xff]
    %v1296 = vld [vmem:[#allocation9 + $0x10] sm:$0xff]
    %v1297 = vld [vmem:[#allocation9 + $0x18] sm:$0xff]
    %v1298 = vld [vmem:[#allocation9 + $0x20] sm:$0xff]
    %v1299 = vld [vmem:[#allocation9 + $0x28] sm:$0xff]
    %v1300 = vld [vmem:[#allocation9 + $0x30] sm:$0xff]
    %v1301 = vld [vmem:[#allocation9 + $0x38] sm:$0xff]
    %v1302 = vld [vmem:[#allocation9 + $0x40] sm:$0xff]
    %v1303 = vld [vmem:[#allocation9 + $0x48] sm:$0xff]
    %v1304 = vld [vmem:[#allocation9 + $0x50] sm:$0xff]
    %v1305 = vld [vmem:[#allocation9 + $0x58] sm:$0xff]
    %v1306 = vld [vmem:[#allocation9 + $0x60] sm:$0xff]
    %v1307 = vld [vmem:[#allocation9 + $0x68] sm:$0xff]
    %v1308 = vld [vmem:[#allocation9 + $0x70] sm:$0xff]
    %v1309 = vld [vmem:[#allocation9 + $0x78] sm:$0xff]
    %v1310 = vld [vmem:[#allocation9 + $0x80] sm:$0xff]
    %v1311 = vld [vmem:[#allocation9 + $0x88] sm:$0xff]
    %v1312 = vld [vmem:[#allocation9 + $0x90] sm:$0xff]
    %v1313 = vld [vmem:[#allocation9 + $0x98] sm:$0xff]
    %v1314 = vld [vmem:[#allocation9 + $0xa0] sm:$0xff]
    %v1315 = vld [vmem:[#allocation9 + $0xa8] sm:$0xff]
    %v1316 = vld [vmem:[#allocation9 + $0xb0] sm:$0xff]
    %v1317 = vld [vmem:[#allocation9 + $0xb8] sm:$0xff]
    %v1318 = vld [vmem:[#allocation9 + $0xc0] sm:$0xff]
    %v1319 = vld [vmem:[#allocation9 + $0xc8] sm:$0xff]
    %v1320 = vld [vmem:[#allocation9 + $0xd0] sm:$0xff]
    %v1321 = vld [vmem:[#allocation9 + $0xd8] sm:$0xff]
    %v1322 = vld [vmem:[#allocation9 + $0xe0] sm:$0xff]
    %v1323 = vld [vmem:[#allocation9 + $0xe8] sm:$0xff]
    %v1324 = vld [vmem:[#allocation9 + $0xf0] sm:$0xff]
    %v1325 = vld [vmem:[#allocation9 + $0xf8] sm:$0xff]
    %v1326 = vld [vmem:[%s16] sm:$0x3]
    %v1328 = vperm.slane %v1326, 0
    %v1329 = vperm.slane %v1326, 1
    %v1364 = vunpack.c.l.b16 %v1294
    %v1365 = vunpack.c.h.b16 %v1294
    %v1366 = vunpack.c.l.b16 %v1295
    %v1367 = vunpack.c.h.b16 %v1295
    %v1368 = vunpack.c.l.b16 %v1296
    %v1369 = vunpack.c.h.b16 %v1296
    %v1370 = vunpack.c.l.b16 %v1297
    %v1371 = vunpack.c.h.b16 %v1297
    %v1372 = vunpack.c.l.b16 %v1298
    %v1373 = vunpack.c.h.b16 %v1298
    %v1374 = vunpack.c.l.b16 %v1299
    %v1375 = vunpack.c.h.b16 %v1299
    %v1376 = vunpack.c.l.b16 %v1300
    %v1377 = vunpack.c.h.b16 %v1300
    %v1378 = vunpack.c.l.b16 %v1301
    %v1379 = vunpack.c.h.b16 %v1301
    %v1380 = vunpack.c.l.b16 %v1302
    %v1381 = vunpack.c.h.b16 %v1302
    %v1382 = vunpack.c.l.b16 %v1303
    %v1383 = vunpack.c.h.b16 %v1303
    %v1384 = vunpack.c.l.b16 %v1304
    %v1385 = vunpack.c.h.b16 %v1304
    %v1386 = vunpack.c.l.b16 %v1305
    %v1387 = vunpack.c.h.b16 %v1305
    %v1388 = vunpack.c.l.b16 %v1306
    %v1389 = vunpack.c.h.b16 %v1306
    %v1390 = vunpack.c.l.b16 %v1307
    %v1391 = vunpack.c.h.b16 %v1307
    %v1392 = vunpack.c.l.b16 %v1308
    %v1393 = vunpack.c.h.b16 %v1308
    %v1394 = vunpack.c.l.b16 %v1309
    %v1395 = vunpack.c.h.b16 %v1309
    %v1396 = vunpack.c.l.b16 %v1310
    %v1397 = vunpack.c.h.b16 %v1310
    %v1398 = vunpack.c.l.b16 %v1311
    %v1399 = vunpack.c.h.b16 %v1311
    %v1400 = vunpack.c.l.b16 %v1312
    %v1401 = vunpack.c.h.b16 %v1312
    %v1402 = vunpack.c.l.b16 %v1313
    %v1403 = vunpack.c.h.b16 %v1313
    %v1404 = vunpack.c.l.b16 %v1314
    %v1405 = vunpack.c.h.b16 %v1314
    %v1406 = vunpack.c.l.b16 %v1315
    %v1407 = vunpack.c.h.b16 %v1315
    %v1408 = vunpack.c.l.b16 %v1316
    %v1409 = vunpack.c.h.b16 %v1316
    %v1410 = vunpack.c.l.b16 %v1317
    %v1411 = vunpack.c.h.b16 %v1317
    %v1412 = vunpack.c.l.b16 %v1318
    %v1413 = vunpack.c.h.b16 %v1318
    %v1414 = vunpack.c.l.b16 %v1319
    %v1415 = vunpack.c.h.b16 %v1319
    %v1416 = vunpack.c.l.b16 %v1320
    %v1417 = vunpack.c.h.b16 %v1320
    %v1418 = vunpack.c.l.b16 %v1321
    %v1419 = vunpack.c.h.b16 %v1321
    %v1420 = vunpack.c.l.b16 %v1322
    %v1421 = vunpack.c.h.b16 %v1322
    %v1422 = vunpack.c.l.b16 %v1323
    %v1423 = vunpack.c.h.b16 %v1323
    %v1424 = vunpack.c.l.b16 %v1324
    %v1425 = vunpack.c.h.b16 %v1324
    %v1426 = vunpack.c.l.b16 %v1325
    %v1427 = vunpack.c.h.b16 %v1325
    %v1428 = vpack.c.b16 %v1366, %v1364
    %v1429 = vpack.c.b16 %v1367, %v1365
    %v1430 = vpack.c.b16 %v1370, %v1368
    %v1431 = vpack.c.b16 %v1371, %v1369
    %v1432 = vpack.c.b16 %v1374, %v1372
    %v1433 = vpack.c.b16 %v1375, %v1373
    %v1434 = vpack.c.b16 %v1378, %v1376
    %v1435 = vpack.c.b16 %v1379, %v1377
    %v1436 = vpack.c.b16 %v1382, %v1380
    %v1437 = vpack.c.b16 %v1383, %v1381
    %v1438 = vpack.c.b16 %v1386, %v1384
    %v1439 = vpack.c.b16 %v1387, %v1385
    %v1440 = vpack.c.b16 %v1390, %v1388
    %v1441 = vpack.c.b16 %v1391, %v1389
    %v1442 = vpack.c.b16 %v1394, %v1392
    %v1443 = vpack.c.b16 %v1395, %v1393
    %v1444 = vpack.c.b16 %v1398, %v1396
    %v1445 = vpack.c.b16 %v1399, %v1397
    %v1446 = vpack.c.b16 %v1402, %v1400
    %v1447 = vpack.c.b16 %v1403, %v1401
    %v1448 = vpack.c.b16 %v1406, %v1404
    %v1449 = vpack.c.b16 %v1407, %v1405
    %v1450 = vpack.c.b16 %v1410, %v1408
    %v1451 = vpack.c.b16 %v1411, %v1409
    %v1452 = vpack.c.b16 %v1414, %v1412
    %v1453 = vpack.c.b16 %v1415, %v1413
    %v1454 = vpack.c.b16 %v1418, %v1416
    %v1455 = vpack.c.b16 %v1419, %v1417
    %v1456 = vpack.c.b16 %v1422, %v1420
    %v1457 = vpack.c.b16 %v1423, %v1421
    %v1458 = vpack.c.b16 %v1426, %v1424
    %v1459 = vpack.c.b16 %v1427, %v1425
    %1492 = vmatpush.bf16.msra.mxu0 %v1442
    %1493 = vmatpush.bf16.msra.mxu0 %v1440
    %1494 = vmatpush.bf16.msra.mxu0 %v1438
    %1495 = vmatpush.bf16.msra.mxu0 %v1436
    %1496 = vmatpush.bf16.msra.mxu0 %v1434
    %1497 = vmatpush.bf16.msra.mxu0 %v1432
    %1498 = vmatpush.bf16.msra.mxu0 %v1430
    %1499 = vmatpush.bf16.msra.mxu0 %v1428
    %1500 = vmatmul.bf16.gmra.mxu0 %v1292
    %v1501 = vpop.f32.mrf.mxu0
    %v1502 = vadd.f32 %v1328, %v1501
    %v1503 = vpop.f32.mrf.mxu0
    %1504 = vdwg.mxu0
    %1505 = vmatpush.bf16.msra.mxu0 %v1458
    %1506 = vmatpush.bf16.msra.mxu0 %v1456
    %1507 = vmatpush.bf16.msra.mxu0 %v1454
    %1508 = vmatpush.bf16.msra.mxu0 %v1452
    %1509 = vmatpush.bf16.msra.mxu0 %v1450
    %1510 = vmatpush.bf16.msra.mxu0 %v1448
    %1511 = vmatpush.bf16.msra.mxu0 %v1446
    %1512 = vmatpush.bf16.msra.mxu0 %v1444
    %1513 = vmatmul.bf16.gmra.mxu0 %v1293
    %v1514 = vpop.f32.mrf.mxu0
    %v1515 = vadd.f32 %v1502, %v1514
    %v1516 = vpop.f32.mrf.mxu0
    %1517 = vdwg.mxu0
    %1518 = vmatpush.bf16.msra.mxu0 %v1443
    %1519 = vmatpush.bf16.msra.mxu0 %v1441
    %1520 = vmatpush.bf16.msra.mxu0 %v1439
    %1521 = vmatpush.bf16.msra.mxu0 %v1437
    %1522 = vmatpush.bf16.msra.mxu0 %v1435
    %1523 = vmatpush.bf16.msra.mxu0 %v1433
    %1524 = vmatpush.bf16.msra.mxu0 %v1431
    %1525 = vmatpush.bf16.msra.mxu0 %v1429
    %1526 = vmatmul.bf16.gmra.mxu0 %v1292
    %v1527 = vpop.f32.mrf.mxu0
    %v1528 = vadd.f32 %v1329, %v1527
    %v1529 = vpop.f32.mrf.mxu0
    %1530 = vdwg.mxu0
    %1531 = vmatpush.bf16.msra.mxu0 %v1459
    %1532 = vmatpush.bf16.msra.mxu0 %v1457
    %1533 = vmatpush.bf16.msra.mxu0 %v1455
    %1534 = vmatpush.bf16.msra.mxu0 %v1453
    %1535 = vmatpush.bf16.msra.mxu0 %v1451
    %1536 = vmatpush.bf16.msra.mxu0 %v1449
    %1537 = vmatpush.bf16.msra.mxu0 %v1447
    %1538 = vmatpush.bf16.msra.mxu0 %v1445
    %1539 = vmatmul.bf16.gmra.mxu0 %v1293
    %v1540 = vpop.f32.mrf.mxu0
    %v1541 = vadd.f32 %v1528, %v1540
    %v1542 = vpop.f32.mrf.mxu0
    %1543 = vdwg.mxu0
    %v1544 = vpack.c.bf16 %v1515, %v1515
    %v1545 = vpack.c.bf16 %v1541, %v1541
    %v1546 = vld [vmem:[#allocation10] sm:$0xff]
    %v1547 = vld [vmem:[#allocation10 + $0x8] sm:$0xff]
    %v1548 = vld [vmem:[#allocation10 + $0x10] sm:$0xff]
    %v1549 = vld [vmem:[#allocation10 + $0x18] sm:$0xff]
    %v1550 = vld [vmem:[#allocation10 + $0x20] sm:$0xff]
    %v1551 = vld [vmem:[#allocation10 + $0x28] sm:$0xff]
    %v1552 = vld [vmem:[#allocation10 + $0x30] sm:$0xff]
    %v1553 = vld [vmem:[#allocation10 + $0x38] sm:$0xff]
    %v1554 = vld [vmem:[#allocation10 + $0x40] sm:$0xff]
    %v1555 = vld [vmem:[#allocation10 + $0x48] sm:$0xff]
    %v1556 = vld [vmem:[#allocation10 + $0x50] sm:$0xff]
    %v1557 = vld [vmem:[#allocation10 + $0x58] sm:$0xff]
    %v1558 = vld [vmem:[#allocation10 + $0x60] sm:$0xff]
    %v1559 = vld [vmem:[#allocation10 + $0x68] sm:$0xff]
    %v1560 = vld [vmem:[#allocation10 + $0x70] sm:$0xff]
    %v1561 = vld [vmem:[#allocation10 + $0x78] sm:$0xff]
    %v1562 = vld [vmem:[#allocation10 + $0x80] sm:$0xff]
    %v1563 = vld [vmem:[#allocation10 + $0x88] sm:$0xff]
    %v1564 = vld [vmem:[#allocation10 + $0x90] sm:$0xff]
    %v1565 = vld [vmem:[#allocation10 + $0x98] sm:$0xff]
    %v1566 = vld [vmem:[#allocation10 + $0xa0] sm:$0xff]
    %v1567 = vld [vmem:[#allocation10 + $0xa8] sm:$0xff]
    %v1568 = vld [vmem:[#allocation10 + $0xb0] sm:$0xff]
    %v1569 = vld [vmem:[#allocation10 + $0xb8] sm:$0xff]
    %v1570 = vld [vmem:[#allocation10 + $0xc0] sm:$0xff]
    %v1571 = vld [vmem:[#allocation10 + $0xc8] sm:$0xff]
    %v1572 = vld [vmem:[#allocation10 + $0xd0] sm:$0xff]
    %v1573 = vld [vmem:[#allocation10 + $0xd8] sm:$0xff]
    %v1574 = vld [vmem:[#allocation10 + $0xe0] sm:$0xff]
    %v1575 = vld [vmem:[#allocation10 + $0xe8] sm:$0xff]
    %v1576 = vld [vmem:[#allocation10 + $0xf0] sm:$0xff]
    %v1577 = vld [vmem:[#allocation10 + $0xf8] sm:$0xff]
    %v1578 = vld [vmem:[%s17] sm:$0x3]
    %v1580 = vperm.slane %v1578, 0
    %v1581 = vperm.slane %v1578, 1
    %v1616 = vunpack.c.l.b16 %v1546
    %v1617 = vunpack.c.h.b16 %v1546
    %v1618 = vunpack.c.l.b16 %v1547
    %v1619 = vunpack.c.h.b16 %v1547
    %v1620 = vunpack.c.l.b16 %v1548
    %v1621 = vunpack.c.h.b16 %v1548
    %v1622 = vunpack.c.l.b16 %v1549
    %v1623 = vunpack.c.h.b16 %v1549
    %v1624 = vunpack.c.l.b16 %v1550
    %v1625 = vunpack.c.h.b16 %v1550
    %v1626 = vunpack.c.l.b16 %v1551
    %v1627 = vunpack.c.h.b16 %v1551
    %v1628 = vunpack.c.l.b16 %v1552
    %v1629 = vunpack.c.h.b16 %v1552
    %v1630 = vunpack.c.l.b16 %v1553
    %v1631 = vunpack.c.h.b16 %v1553
    %v1632 = vunpack.c.l.b16 %v1554
    %v1633 = vunpack.c.h.b16 %v1554
    %v1634 = vunpack.c.l.b16 %v1555
    %v1635 = vunpack.c.h.b16 %v1555
    %v1636 = vunpack.c.l.b16 %v1556
    %v1637 = vunpack.c.h.b16 %v1556
    %v1638 = vunpack.c.l.b16 %v1557
    %v1639 = vunpack.c.h.b16 %v1557
    %v1640 = vunpack.c.l.b16 %v1558
    %v1641 = vunpack.c.h.b16 %v1558
    %v1642 = vunpack.c.l.b16 %v1559
    %v1643 = vunpack.c.h.b16 %v1559
    %v1644 = vunpack.c.l.b16 %v1560
    %v1645 = vunpack.c.h.b16 %v1560
    %v1646 = vunpack.c.l.b16 %v1561
    %v1647 = vunpack.c.h.b16 %v1561
    %v1648 = vunpack.c.l.b16 %v1562
    %v1649 = vunpack.c.h.b16 %v1562
    %v1650 = vunpack.c.l.b16 %v1563
    %v1651 = vunpack.c.h.b16 %v1563
    %v1652 = vunpack.c.l.b16 %v1564
    %v1653 = vunpack.c.h.b16 %v1564
    %v1654 = vunpack.c.l.b16 %v1565
    %v1655 = vunpack.c.h.b16 %v1565
    %v1656 = vunpack.c.l.b16 %v1566
    %v1657 = vunpack.c.h.b16 %v1566
    %v1658 = vunpack.c.l.b16 %v1567
    %v1659 = vunpack.c.h.b16 %v1567
    %v1660 = vunpack.c.l.b16 %v1568
    %v1661 = vunpack.c.h.b16 %v1568
    %v1662 = vunpack.c.l.b16 %v1569
    %v1663 = vunpack.c.h.b16 %v1569
    %v1664 = vunpack.c.l.b16 %v1570
    %v1665 = vunpack.c.h.b16 %v1570
    %v1666 = vunpack.c.l.b16 %v1571
    %v1667 = vunpack.c.h.b16 %v1571
    %v1668 = vunpack.c.l.b16 %v1572
    %v1669 = vunpack.c.h.b16 %v1572
    %v1670 = vunpack.c.l.b16 %v1573
    %v1671 = vunpack.c.h.b16 %v1573
    %v1672 = vunpack.c.l.b16 %v1574
    %v1673 = vunpack.c.h.b16 %v1574
    %v1674 = vunpack.c.l.b16 %v1575
    %v1675 = vunpack.c.h.b16 %v1575
    %v1676 = vunpack.c.l.b16 %v1576
    %v1677 = vunpack.c.h.b16 %v1576
    %v1678 = vunpack.c.l.b16 %v1577
    %v1679 = vunpack.c.h.b16 %v1577
    %v1680 = vpack.c.b16 %v1618, %v1616
    %v1681 = vpack.c.b16 %v1619, %v1617
    %v1682 = vpack.c.b16 %v1622, %v1620
    %v1683 = vpack.c.b16 %v1623, %v1621
    %v1684 = vpack.c.b16 %v1626, %v1624
    %v1685 = vpack.c.b16 %v1627, %v1625
    %v1686 = vpack.c.b16 %v1630, %v1628
    %v1687 = vpack.c.b16 %v1631, %v1629
    %v1688 = vpack.c.b16 %v1634, %v1632
    %v1689 = vpack.c.b16 %v1635, %v1633
    %v1690 = vpack.c.b16 %v1638, %v1636
    %v1691 = vpack.c.b16 %v1639, %v1637
    %v1692 = vpack.c.b16 %v1642, %v1640
    %v1693 = vpack.c.b16 %v1643, %v1641
    %v1694 = vpack.c.b16 %v1646, %v1644
    %v1695 = vpack.c.b16 %v1647, %v1645
    %v1696 = vpack.c.b16 %v1650, %v1648
    %v1697 = vpack.c.b16 %v1651, %v1649
    %v1698 = vpack.c.b16 %v1654, %v1652
    %v1699 = vpack.c.b16 %v1655, %v1653
    %v1700 = vpack.c.b16 %v1658, %v1656
    %v1701 = vpack.c.b16 %v1659, %v1657
    %v1702 = vpack.c.b16 %v1662, %v1660
    %v1703 = vpack.c.b16 %v1663, %v1661
    %v1704 = vpack.c.b16 %v1666, %v1664
    %v1705 = vpack.c.b16 %v1667, %v1665
    %v1706 = vpack.c.b16 %v1670, %v1668
    %v1707 = vpack.c.b16 %v1671, %v1669
    %v1708 = vpack.c.b16 %v1674, %v1672
    %v1709 = vpack.c.b16 %v1675, %v1673
    %v1710 = vpack.c.b16 %v1678, %v1676
    %v1711 = vpack.c.b16 %v1679, %v1677
    %1744 = vmatpush.bf16.msra.mxu0 %v1694
    %1745 = vmatpush.bf16.msra.mxu0 %v1692
    %1746 = vmatpush.bf16.msra.mxu0 %v1690
    %1747 = vmatpush.bf16.msra.mxu0 %v1688
    %1748 = vmatpush.bf16.msra.mxu0 %v1686
    %1749 = vmatpush.bf16.msra.mxu0 %v1684
    %1750 = vmatpush.bf16.msra.mxu0 %v1682
    %1751 = vmatpush.bf16.msra.mxu0 %v1680
    %1752 = vmatmul.bf16.gmra.mxu0 %v1544
    %v1753 = vpop.f32.mrf.mxu0
    %v1754 = vadd.f32 %v1580, %v1753
    %v1755 = vpop.f32.mrf.mxu0
    %1756 = vdwg.mxu0
    %1757 = vmatpush.bf16.msra.mxu0 %v1710
    %1758 = vmatpush.bf16.msra.mxu0 %v1708
    %1759 = vmatpush.bf16.msra.mxu0 %v1706
    %1760 = vmatpush.bf16.msra.mxu0 %v1704
    %1761 = vmatpush.bf16.msra.mxu0 %v1702
    %1762 = vmatpush.bf16.msra.mxu0 %v1700
    %1763 = vmatpush.bf16.msra.mxu0 %v1698
    %1764 = vmatpush.bf16.msra.mxu0 %v1696
    %1765 = vmatmul.bf16.gmra.mxu0 %v1545
    %v1766 = vpop.f32.mrf.mxu0
    %v1767 = vadd.f32 %v1754, %v1766
    %v1768 = vpop.f32.mrf.mxu0
    %1769 = vdwg.mxu0
    %1770 = vmatpush.bf16.msra.mxu0 %v1695
    %1771 = vmatpush.bf16.msra.mxu0 %v1693
    %1772 = vmatpush.bf16.msra.mxu0 %v1691
    %1773 = vmatpush.bf16.msra.mxu0 %v1689
    %1774 = vmatpush.bf16.msra.mxu0 %v1687
    %1775 = vmatpush.bf16.msra.mxu0 %v1685
    %1776 = vmatpush.bf16.msra.mxu0 %v1683
    %1777 = vmatpush.bf16.msra.mxu0 %v1681
    %1778 = vmatmul.bf16.gmra.mxu0 %v1544
    %v1779 = vpop.f32.mrf.mxu0
    %v1780 = vadd.f32 %v1581, %v1779
    %v1781 = vpop.f32.mrf.mxu0
    %1782 = vdwg.mxu0
    %1783 = vmatpush.bf16.msra.mxu0 %v1711
    %1784 = vmatpush.bf16.msra.mxu0 %v1709
    %1785 = vmatpush.bf16.msra.mxu0 %v1707
    %1786 = vmatpush.bf16.msra.mxu0 %v1705
    %1787 = vmatpush.bf16.msra.mxu0 %v1703
    %1788 = vmatpush.bf16.msra.mxu0 %v1701
    %1789 = vmatpush.bf16.msra.mxu0 %v1699
    %1790 = vmatpush.bf16.msra.mxu0 %v1697
    %1791 = vmatmul.bf16.gmra.mxu0 %v1545
    %v1792 = vpop.f32.mrf.mxu0
    %v1793 = vadd.f32 %v1780, %v1792
    %v1794 = vpop.f32.mrf.mxu0
    %1795 = vdwg.mxu0
    %v1796 = vpack.c.bf16 %v1767, %v1767
    %v1797 = vpack.c.bf16 %v1793, %v1793
    %v1798 = vld [vmem:[#allocation12] sm:$0xff]
    %v1799 = vld [vmem:[#allocation12 + $0x8] sm:$0xff]
    %v1800 = vld [vmem:[#allocation12 + $0x10] sm:$0xff]
    %v1801 = vld [vmem:[#allocation12 + $0x18] sm:$0xff]
    %v1802 = vld [vmem:[#allocation12 + $0x20] sm:$0xff]
    %v1803 = vld [vmem:[#allocation12 + $0x28] sm:$0xff]
    %v1804 = vld [vmem:[#allocation12 + $0x30] sm:$0xff]
    %v1805 = vld [vmem:[#allocation12 + $0x38] sm:$0xff]
    %v1806 = vld [vmem:[#allocation12 + $0x40] sm:$0xff]
    %v1807 = vld [vmem:[#allocation12 + $0x48] sm:$0xff]
    %v1808 = vld [vmem:[#allocation12 + $0x50] sm:$0xff]
    %v1809 = vld [vmem:[#allocation12 + $0x58] sm:$0xff]
    %v1810 = vld [vmem:[#allocation12 + $0x60] sm:$0xff]
    %v1811 = vld [vmem:[#allocation12 + $0x68] sm:$0xff]
    %v1812 = vld [vmem:[#allocation12 + $0x70] sm:$0xff]
    %v1813 = vld [vmem:[#allocation12 + $0x78] sm:$0xff]
    %v1814 = vld [vmem:[#allocation12 + $0x80] sm:$0xff]
    %v1815 = vld [vmem:[#allocation12 + $0x88] sm:$0xff]
    %v1816 = vld [vmem:[#allocation12 + $0x90] sm:$0xff]
    %v1817 = vld [vmem:[#allocation12 + $0x98] sm:$0xff]
    %v1818 = vld [vmem:[#allocation12 + $0xa0] sm:$0xff]
    %v1819 = vld [vmem:[#allocation12 + $0xa8] sm:$0xff]
    %v1820 = vld [vmem:[#allocation12 + $0xb0] sm:$0xff]
    %v1821 = vld [vmem:[#allocation12 + $0xb8] sm:$0xff]
    %v1822 = vld [vmem:[#allocation12 + $0xc0] sm:$0xff]
    %v1823 = vld [vmem:[#allocation12 + $0xc8] sm:$0xff]
    %v1824 = vld [vmem:[#allocation12 + $0xd0] sm:$0xff]
    %v1825 = vld [vmem:[#allocation12 + $0xd8] sm:$0xff]
    %v1826 = vld [vmem:[#allocation12 + $0xe0] sm:$0xff]
    %v1827 = vld [vmem:[#allocation12 + $0xe8] sm:$0xff]
    %v1828 = vld [vmem:[#allocation12 + $0xf0] sm:$0xff]
    %v1829 = vld [vmem:[#allocation12 + $0xf8] sm:$0xff]
    %v1830 = vld [vmem:[#allocation12 + $0x100] sm:$0xff]
    %v1831 = vld [vmem:[#allocation12 + $0x108] sm:$0xff]
    %v1832 = vld [vmem:[#allocation12 + $0x110] sm:$0xff]
    %v1833 = vld [vmem:[#allocation12 + $0x118] sm:$0xff]
    %v1834 = vld [vmem:[#allocation12 + $0x120] sm:$0xff]
    %v1835 = vld [vmem:[#allocation12 + $0x128] sm:$0xff]
    %v1836 = vld [vmem:[#allocation12 + $0x130] sm:$0xff]
    %v1837 = vld [vmem:[#allocation12 + $0x138] sm:$0xff]
    %v1838 = vld [vmem:[#allocation12 + $0x140] sm:$0xff]
    %v1839 = vld [vmem:[#allocation12 + $0x148] sm:$0xff]
    %v1840 = vld [vmem:[#allocation12 + $0x150] sm:$0xff]
    %v1841 = vld [vmem:[#allocation12 + $0x158] sm:$0xff]
    %v1842 = vld [vmem:[#allocation12 + $0x160] sm:$0xff]
    %v1843 = vld [vmem:[#allocation12 + $0x168] sm:$0xff]
    %v1844 = vld [vmem:[#allocation12 + $0x170] sm:$0xff]
    %v1845 = vld [vmem:[#allocation12 + $0x178] sm:$0xff]
    %v1846 = vld [vmem:[#allocation12 + $0x180] sm:$0xff]
    %v1847 = vld [vmem:[#allocation12 + $0x188] sm:$0xff]
    %v1848 = vld [vmem:[#allocation12 + $0x190] sm:$0xff]
    %v1849 = vld [vmem:[#allocation12 + $0x198] sm:$0xff]
    %v1850 = vld [vmem:[#allocation12 + $0x1a0] sm:$0xff]
    %v1851 = vld [vmem:[#allocation12 + $0x1a8] sm:$0xff]
    %v1852 = vld [vmem:[#allocation12 + $0x1b0] sm:$0xff]
    %v1853 = vld [vmem:[#allocation12 + $0x1b8] sm:$0xff]
    %v1854 = vld [vmem:[#allocation12 + $0x1c0] sm:$0xff]
    %v1855 = vld [vmem:[#allocation12 + $0x1c8] sm:$0xff]
    %v1856 = vld [vmem:[#allocation12 + $0x1d0] sm:$0xff]
    %v1857 = vld [vmem:[#allocation12 + $0x1d8] sm:$0xff]
    %v1858 = vld [vmem:[#allocation12 + $0x1e0] sm:$0xff]
    %v1859 = vld [vmem:[#allocation12 + $0x1e8] sm:$0xff]
    %v1860 = vld [vmem:[#allocation12 + $0x1f0] sm:$0xff]
    %v1861 = vld [vmem:[#allocation12 + $0x1f8] sm:$0xff]
    %v1862 = vld [vmem:[%s18] sm:$0xf]
    %v1864 = vperm.slane %v1862, 0
    %v1865 = vperm.slane %v1862, 1
    %v1866 = vperm.slane %v1862, 2
    %v1867 = vperm.slane %v1862, 3
    %v1936 = vunpack.c.l.b16 %v1798
    %v1937 = vunpack.c.h.b16 %v1798
    %v1938 = vunpack.c.l.b16 %v1799
    %v1939 = vunpack.c.h.b16 %v1799
    %v1940 = vunpack.c.l.b16 %v1800
    %v1941 = vunpack.c.h.b16 %v1800
    %v1942 = vunpack.c.l.b16 %v1801
    %v1943 = vunpack.c.h.b16 %v1801
    %v1944 = vunpack.c.l.b16 %v1802
    %v1945 = vunpack.c.h.b16 %v1802
    %v1946 = vunpack.c.l.b16 %v1803
    %v1947 = vunpack.c.h.b16 %v1803
    %v1948 = vunpack.c.l.b16 %v1804
    %v1949 = vunpack.c.h.b16 %v1804
    %v1950 = vunpack.c.l.b16 %v1805
    %v1951 = vunpack.c.h.b16 %v1805
    %v1952 = vunpack.c.l.b16 %v1806
    %v1953 = vunpack.c.h.b16 %v1806
    %v1954 = vunpack.c.l.b16 %v1807
    %v1955 = vunpack.c.h.b16 %v1807
    %v1956 = vunpack.c.l.b16 %v1808
    %v1957 = vunpack.c.h.b16 %v1808
    %v1958 = vunpack.c.l.b16 %v1809
    %v1959 = vunpack.c.h.b16 %v1809
    %v1960 = vunpack.c.l.b16 %v1810
    %v1961 = vunpack.c.h.b16 %v1810
    %v1962 = vunpack.c.l.b16 %v1811
    %v1963 = vunpack.c.h.b16 %v1811
    %v1964 = vunpack.c.l.b16 %v1812
    %v1965 = vunpack.c.h.b16 %v1812
    %v1966 = vunpack.c.l.b16 %v1813
    %v1967 = vunpack.c.h.b16 %v1813
    %v1968 = vunpack.c.l.b16 %v1814
    %v1969 = vunpack.c.h.b16 %v1814
    %v1970 = vunpack.c.l.b16 %v1815
    %v1971 = vunpack.c.h.b16 %v1815
    %v1972 = vunpack.c.l.b16 %v1816
    %v1973 = vunpack.c.h.b16 %v1816
    %v1974 = vunpack.c.l.b16 %v1817
    %v1975 = vunpack.c.h.b16 %v1817
    %v1976 = vunpack.c.l.b16 %v1818
    %v1977 = vunpack.c.h.b16 %v1818
    %v1978 = vunpack.c.l.b16 %v1819
    %v1979 = vunpack.c.h.b16 %v1819
    %v1980 = vunpack.c.l.b16 %v1820
    %v1981 = vunpack.c.h.b16 %v1820
    %v1982 = vunpack.c.l.b16 %v1821
    %v1983 = vunpack.c.h.b16 %v1821
    %v1984 = vunpack.c.l.b16 %v1822
    %v1985 = vunpack.c.h.b16 %v1822
    %v1986 = vunpack.c.l.b16 %v1823
    %v1987 = vunpack.c.h.b16 %v1823
    %v1988 = vunpack.c.l.b16 %v1824
    %v1989 = vunpack.c.h.b16 %v1824
    %v1990 = vunpack.c.l.b16 %v1825
    %v1991 = vunpack.c.h.b16 %v1825
    %v1992 = vunpack.c.l.b16 %v1826
    %v1993 = vunpack.c.h.b16 %v1826
    %v1994 = vunpack.c.l.b16 %v1827
    %v1995 = vunpack.c.h.b16 %v1827
    %v1996 = vunpack.c.l.b16 %v1828
    %v1997 = vunpack.c.h.b16 %v1828
    %v1998 = vunpack.c.l.b16 %v1829
    %v1999 = vunpack.c.h.b16 %v1829
    %v2000 = vunpack.c.l.b16 %v1830
    %v2001 = vunpack.c.h.b16 %v1830
    %v2002 = vunpack.c.l.b16 %v1831
    %v2003 = vunpack.c.h.b16 %v1831
    %v2004 = vunpack.c.l.b16 %v1832
    %v2005 = vunpack.c.h.b16 %v1832
    %v2006 = vunpack.c.l.b16 %v1833
    %v2007 = vunpack.c.h.b16 %v1833
    %v2008 = vunpack.c.l.b16 %v1834
    %v2009 = vunpack.c.h.b16 %v1834
    %v2010 = vunpack.c.l.b16 %v1835
    %v2011 = vunpack.c.h.b16 %v1835
    %v2012 = vunpack.c.l.b16 %v1836
    %v2013 = vunpack.c.h.b16 %v1836
    %v2014 = vunpack.c.l.b16 %v1837
    %v2015 = vunpack.c.h.b16 %v1837
    %v2016 = vunpack.c.l.b16 %v1838
    %v2017 = vunpack.c.h.b16 %v1838
    %v2018 = vunpack.c.l.b16 %v1839
    %v2019 = vunpack.c.h.b16 %v1839
    %v2020 = vunpack.c.l.b16 %v1840
    %v2021 = vunpack.c.h.b16 %v1840
    %v2022 = vunpack.c.l.b16 %v1841
    %v2023 = vunpack.c.h.b16 %v1841
    %v2024 = vunpack.c.l.b16 %v1842
    %v2025 = vunpack.c.h.b16 %v1842
    %v2026 = vunpack.c.l.b16 %v1843
    %v2027 = vunpack.c.h.b16 %v1843
    %v2028 = vunpack.c.l.b16 %v1844
    %v2029 = vunpack.c.h.b16 %v1844
    %v2030 = vunpack.c.l.b16 %v1845
    %v2031 = vunpack.c.h.b16 %v1845
    %v2032 = vunpack.c.l.b16 %v1846
    %v2033 = vunpack.c.h.b16 %v1846
    %v2034 = vunpack.c.l.b16 %v1847
    %v2035 = vunpack.c.h.b16 %v1847
    %v2036 = vunpack.c.l.b16 %v1848
    %v2037 = vunpack.c.h.b16 %v1848
    %v2038 = vunpack.c.l.b16 %v1849
    %v2039 = vunpack.c.h.b16 %v1849
    %v2040 = vunpack.c.l.b16 %v1850
    %v2041 = vunpack.c.h.b16 %v1850
    %v2042 = vunpack.c.l.b16 %v1851
    %v2043 = vunpack.c.h.b16 %v1851
    %v2044 = vunpack.c.l.b16 %v1852
    %v2045 = vunpack.c.h.b16 %v1852
    %v2046 = vunpack.c.l.b16 %v1853
    %v2047 = vunpack.c.h.b16 %v1853
    %v2048 = vunpack.c.l.b16 %v1854
    %v2049 = vunpack.c.h.b16 %v1854
    %v2050 = vunpack.c.l.b16 %v1855
    %v2051 = vunpack.c.h.b16 %v1855
    %v2052 = vunpack.c.l.b16 %v1856
    %v2053 = vunpack.c.h.b16 %v1856
    %v2054 = vunpack.c.l.b16 %v1857
    %v2055 = vunpack.c.h.b16 %v1857
    %v2056 = vunpack.c.l.b16 %v1858
    %v2057 = vunpack.c.h.b16 %v1858
    %v2058 = vunpack.c.l.b16 %v1859
    %v2059 = vunpack.c.h.b16 %v1859
    %v2060 = vunpack.c.l.b16 %v1860
    %v2061 = vunpack.c.h.b16 %v1860
    %v2062 = vunpack.c.l.b16 %v1861
    %v2063 = vunpack.c.h.b16 %v1861
    %v2064 = vpack.c.b16 %v1940, %v1936
    %v2065 = vpack.c.b16 %v1941, %v1937
    %v2066 = vpack.c.b16 %v1942, %v1938
    %v2067 = vpack.c.b16 %v1943, %v1939
    %v2068 = vpack.c.b16 %v1948, %v1944
    %v2069 = vpack.c.b16 %v1949, %v1945
    %v2070 = vpack.c.b16 %v1950, %v1946
    %v2071 = vpack.c.b16 %v1951, %v1947
    %v2072 = vpack.c.b16 %v1956, %v1952
    %v2073 = vpack.c.b16 %v1957, %v1953
    %v2074 = vpack.c.b16 %v1958, %v1954
    %v2075 = vpack.c.b16 %v1959, %v1955
    %v2076 = vpack.c.b16 %v1964, %v1960
    %v2077 = vpack.c.b16 %v1965, %v1961
    %v2078 = vpack.c.b16 %v1966, %v1962
    %v2079 = vpack.c.b16 %v1967, %v1963
    %v2080 = vpack.c.b16 %v1972, %v1968
    %v2081 = vpack.c.b16 %v1973, %v1969
    %v2082 = vpack.c.b16 %v1974, %v1970
    %v2083 = vpack.c.b16 %v1975, %v1971
    %v2084 = vpack.c.b16 %v1980, %v1976
    %v2085 = vpack.c.b16 %v1981, %v1977
    %v2086 = vpack.c.b16 %v1982, %v1978
    %v2087 = vpack.c.b16 %v1983, %v1979
    %v2088 = vpack.c.b16 %v1988, %v1984
    %v2089 = vpack.c.b16 %v1989, %v1985
    %v2090 = vpack.c.b16 %v1990, %v1986
    %v2091 = vpack.c.b16 %v1991, %v1987
    %v2092 = vpack.c.b16 %v1996, %v1992
    %v2093 = vpack.c.b16 %v1997, %v1993
    %v2094 = vpack.c.b16 %v1998, %v1994
    %v2095 = vpack.c.b16 %v1999, %v1995
    %v2096 = vpack.c.b16 %v2004, %v2000
    %v2097 = vpack.c.b16 %v2005, %v2001
    %v2098 = vpack.c.b16 %v2006, %v2002
    %v2099 = vpack.c.b16 %v2007, %v2003
    %v2100 = vpack.c.b16 %v2012, %v2008
    %v2101 = vpack.c.b16 %v2013, %v2009
    %v2102 = vpack.c.b16 %v2014, %v2010
    %v2103 = vpack.c.b16 %v2015, %v2011
    %v2104 = vpack.c.b16 %v2020, %v2016
    %v2105 = vpack.c.b16 %v2021, %v2017
    %v2106 = vpack.c.b16 %v2022, %v2018
    %v2107 = vpack.c.b16 %v2023, %v2019
    %v2108 = vpack.c.b16 %v2028, %v2024
    %v2109 = vpack.c.b16 %v2029, %v2025
    %v2110 = vpack.c.b16 %v2030, %v2026
    %v2111 = vpack.c.b16 %v2031, %v2027
    %v2112 = vpack.c.b16 %v2036, %v2032
    %v2113 = vpack.c.b16 %v2037, %v2033
    %v2114 = vpack.c.b16 %v2038, %v2034
    %v2115 = vpack.c.b16 %v2039, %v2035
    %v2116 = vpack.c.b16 %v2044, %v2040
    %v2117 = vpack.c.b16 %v2045, %v2041
    %v2118 = vpack.c.b16 %v2046, %v2042
    %v2119 = vpack.c.b16 %v2047, %v2043
    %v2120 = vpack.c.b16 %v2052, %v2048
    %v2121 = vpack.c.b16 %v2053, %v2049
    %v2122 = vpack.c.b16 %v2054, %v2050
    %v2123 = vpack.c.b16 %v2055, %v2051
    %v2124 = vpack.c.b16 %v2060, %v2056
    %v2125 = vpack.c.b16 %v2061, %v2057
    %v2126 = vpack.c.b16 %v2062, %v2058
    %v2127 = vpack.c.b16 %v2063, %v2059
    %2192 = vmatpush.bf16.msra.mxu0 %v2092
    %2193 = vmatpush.bf16.msra.mxu0 %v2088
    %2194 = vmatpush.bf16.msra.mxu0 %v2084
    %2195 = vmatpush.bf16.msra.mxu0 %v2080
    %2196 = vmatpush.bf16.msra.mxu0 %v2076
    %2197 = vmatpush.bf16.msra.mxu0 %v2072
    %2198 = vmatpush.bf16.msra.mxu0 %v2068
    %2199 = vmatpush.bf16.msra.mxu0 %v2064
    %2200 = vmatmul.bf16.gmra.mxu0 %v1796
    %v2201 = vpop.f32.mrf.mxu0
    %v2202 = vadd.f32 %v1864, %v2201
    %v2203 = vpop.f32.mrf.mxu0
    %2204 = vdwg.mxu0
    %2205 = vmatpush.bf16.msra.mxu0 %v2124
    %2206 = vmatpush.bf16.msra.mxu0 %v2120
    %2207 = vmatpush.bf16.msra.mxu0 %v2116
    %2208 = vmatpush.bf16.msra.mxu0 %v2112
    %2209 = vmatpush.bf16.msra.mxu0 %v2108
    %2210 = vmatpush.bf16.msra.mxu0 %v2104
    %2211 = vmatpush.bf16.msra.mxu0 %v2100
    %2212 = vmatpush.bf16.msra.mxu0 %v2096
    %2213 = vmatmul.bf16.gmra.mxu0 %v1797
    %v2214 = vpop.f32.mrf.mxu0
    %v2215 = vadd.f32 %v2202, %v2214
    %v2216 = vpop.f32.mrf.mxu0
    %2217 = vdwg.mxu0
    %2218 = vmatpush.bf16.msra.mxu0 %v2093
    %2219 = vmatpush.bf16.msra.mxu0 %v2089
    %2220 = vmatpush.bf16.msra.mxu0 %v2085
    %2221 = vmatpush.bf16.msra.mxu0 %v2081
    %2222 = vmatpush.bf16.msra.mxu0 %v2077
    %2223 = vmatpush.bf16.msra.mxu0 %v2073
    %2224 = vmatpush.bf16.msra.mxu0 %v2069
    %2225 = vmatpush.bf16.msra.mxu0 %v2065
    %2226 = vmatmul.bf16.gmra.mxu0 %v1796
    %v2227 = vpop.f32.mrf.mxu0
    %v2228 = vadd.f32 %v1865, %v2227
    %v2229 = vpop.f32.mrf.mxu0
    %2230 = vdwg.mxu0
    %2231 = vmatpush.bf16.msra.mxu0 %v2125
    %2232 = vmatpush.bf16.msra.mxu0 %v2121
    %2233 = vmatpush.bf16.msra.mxu0 %v2117
    %2234 = vmatpush.bf16.msra.mxu0 %v2113
    %2235 = vmatpush.bf16.msra.mxu0 %v2109
    %2236 = vmatpush.bf16.msra.mxu0 %v2105
    %2237 = vmatpush.bf16.msra.mxu0 %v2101
    %2238 = vmatpush.bf16.msra.mxu0 %v2097
    %2239 = vmatmul.bf16.gmra.mxu0 %v1797
    %v2240 = vpop.f32.mrf.mxu0
    %v2241 = vadd.f32 %v2228, %v2240
    %v2242 = vpop.f32.mrf.mxu0
    %2243 = vdwg.mxu0
    %2244 = vmatpush.bf16.msra.mxu0 %v2094
    %2245 = vmatpush.bf16.msra.mxu0 %v2090
    %2246 = vmatpush.bf16.msra.mxu0 %v2086
    %2247 = vmatpush.bf16.msra.mxu0 %v2082
    %2248 = vmatpush.bf16.msra.mxu0 %v2078
    %2249 = vmatpush.bf16.msra.mxu0 %v2074
    %2250 = vmatpush.bf16.msra.mxu0 %v2070
    %2251 = vmatpush.bf16.msra.mxu0 %v2066
    %2252 = vmatmul.bf16.gmra.mxu0 %v1796
    %v2253 = vpop.f32.mrf.mxu0
    %v2254 = vadd.f32 %v1866, %v2253
    %v2255 = vpop.f32.mrf.mxu0
    %2256 = vdwg.mxu0
    %2257 = vmatpush.bf16.msra.mxu0 %v2126
    %2258 = vmatpush.bf16.msra.mxu0 %v2122
    %2259 = vmatpush.bf16.msra.mxu0 %v2118
    %2260 = vmatpush.bf16.msra.mxu0 %v2114
    %2261 = vmatpush.bf16.msra.mxu0 %v2110
    %2262 = vmatpush.bf16.msra.mxu0 %v2106
    %2263 = vmatpush.bf16.msra.mxu0 %v2102
    %2264 = vmatpush.bf16.msra.mxu0 %v2098
    %2265 = vmatmul.bf16.gmra.mxu0 %v1797
    %v2266 = vpop.f32.mrf.mxu0
    %v2267 = vadd.f32 %v2254, %v2266
    %v2268 = vpop.f32.mrf.mxu0
    %2269 = vdwg.mxu0
    %2270 = vmatpush.bf16.msra.mxu0 %v2095
    %2271 = vmatpush.bf16.msra.mxu0 %v2091
    %2272 = vmatpush.bf16.msra.mxu0 %v2087
    %2273 = vmatpush.bf16.msra.mxu0 %v2083
    %2274 = vmatpush.bf16.msra.mxu0 %v2079
    %2275 = vmatpush.bf16.msra.mxu0 %v2075
    %2276 = vmatpush.bf16.msra.mxu0 %v2071
    %2277 = vmatpush.bf16.msra.mxu0 %v2067
    %2278 = vmatmul.bf16.gmra.mxu0 %v1796
    %v2279 = vpop.f32.mrf.mxu0
    %v2280 = vadd.f32 %v1867, %v2279
    %v2281 = vpop.f32.mrf.mxu0
    %2282 = vdwg.mxu0
    %2283 = vmatpush.bf16.msra.mxu0 %v2127
    %2284 = vmatpush.bf16.msra.mxu0 %v2123
    %2285 = vmatpush.bf16.msra.mxu0 %v2119
    %2286 = vmatpush.bf16.msra.mxu0 %v2115
    %2287 = vmatpush.bf16.msra.mxu0 %v2111
    %2288 = vmatpush.bf16.msra.mxu0 %v2107
    %2289 = vmatpush.bf16.msra.mxu0 %v2103
    %2290 = vmatpush.bf16.msra.mxu0 %v2099
    %2291 = vmatmul.bf16.gmra.mxu0 %v1797
    %v2292 = vpop.f32.mrf.mxu0
    %v2293 = vadd.f32 %v2280, %v2292
    %v2294 = vpop.f32.mrf.mxu0
    %2295 = vdwg.mxu0
    %v2296 = vmul.f32 %v2215, 0.5
    %v2297 = vmul.f32 %v2241, 0.5
    %v2298 = vmul.f32 %v2267, 0.5
    %v2299 = vmul.f32 %v2293, 0.5
    %v2300 = vmul.f32 %v2215, %v2215
    %v2301 = vmul.f32 %v2241, %v2241
    %v2302 = vmul.f32 %v2267, %v2267
    %v2303 = vmul.f32 %v2293, %v2293
    %v2304 = vmul.f32 %v2300, %v2215
    %v2305 = vmul.f32 %v2301, %v2241
    %v2306 = vmul.f32 %v2302, %v2267
    %v2307 = vmul.f32 %v2303, %v2293
    %v2308 = vmul.f32 %v2304, 0.044715
    %v2309 = vmul.f32 %v2305, 0.044715
    %v2310 = vmul.f32 %v2306, 0.044715
    %v2311 = vmul.f32 %v2307, 0.044715
    %v2312 = vadd.f32 %v2215, %v2308
    %v2313 = vadd.f32 %v2241, %v2309
    %v2314 = vadd.f32 %v2267, %v2310
    %v2315 = vadd.f32 %v2293, %v2311
    %v2316 = vmul.f32 %v2312, 0.7978846
    %v2317 = vmul.f32 %v2313, 0.7978846
    %v2318 = vmul.f32 %v2314, 0.7978846
    %v2319 = vmul.f32 %v2315, 0.7978846
    %v2320 = vtanh.pop %v2316
    %v2321 = vtanh.pop %v2317
    %v2322 = vtanh.pop %v2318
    %v2323 = vtanh.pop %v2319
    %v2324 = vadd.f32 %v2320, 1.0
    %v2325 = vadd.f32 %v2321, 1.0
    %v2326 = vadd.f32 %v2322, 1.0
    %v2327 = vadd.f32 %v2323, 1.0
    %v2328 = vmul.f32 %v2296, %v2324
    %v2329 = vmul.f32 %v2297, %v2325
    %v2330 = vmul.f32 %v2298, %v2326
    %v2331 = vmul.f32 %v2299, %v2327
    %2332 = vst [vmem:[%s19] sm:$0xff] %v2328
    %2333 = vst [vmem:[%s19 + $0x8] sm:$0xff] %v2329
    %2334 = vst [vmem:[%s19 + $0x10] sm:$0xff] %v2330
    %2335 = vst [vmem:[%s19 + $0x18] sm:$0xff] %v2331
    // Predicated region
    $region106: #{model_forward.1} parent=1 // pred_check
      _
    $region107: #{model_forward.1} parent=1 // pred_check_branch
      %2337 = sbr.rel (0) target = $region109
    $region108: #{model_forward.1} parent=1 // pred_region
      _
    $region109: #{model_forward.1} parent=1 // pred_fallthru
      _
    // Predicated region
    $region110: #{model_forward.1} parent=1 // pred_check
      _
    $region111: #{model_forward.1} parent=1 // pred_check_branch
      %2339 = sbr.rel (0) target = $region113
    $region112: #{model_forward.1} parent=1 // pred_region
      _
    $region113: #{model_forward.1} parent=1 // pred_fallthru
      _
    %2340 = vsyncpa [#allocation3], 1
    %2341 = vsyncpa [#allocation5], 1
    %2342 = vsyncpa [#allocation8], 1
    %2343 = vsyncpa [#allocation11], 1

</llo_original>
